<compile_context>
chip_gen: v7x
topology: tpu7x:2x2x1
jax: 0.10.0
libtpu: 0.0.40
codegen_flags: <defaults>
</compile_context>

<pallas_src>
import functools

import jax
import jax.numpy as jnp
from jax.experimental import pallas as pl
from jax.experimental.pallas import tpu as pltpu


# ---------------------------------------------------------------------------
# Fused kernel: one grid step == one batch element, everything stays in VMEM.
# ---------------------------------------------------------------------------
def _cross_attention_kernel(x1_ref, x2_ref, x3_ref,
                            wq_ref, wk_ref, wv_ref, wp_ref, bp_ref,
                            o_ref, *, num_heads):
    # x*_ref : (1, N, C)    w*_ref : (C, C) pre-transposed    bp_ref : (1, C)
    x1 = x1_ref[0]                                   # (N, C)
    x2 = x2_ref[0]
    x3 = x3_ref[0]

    # Projections (qkv_bias=False).  Softmax scale is pre-folded into wq_ref.
    q = jnp.dot(x1, wq_ref[...], preferred_element_type=jnp.float32)   # (N, C)
    k = jnp.dot(x2, wk_ref[...], preferred_element_type=jnp.float32)   # (N, C)
    v = jnp.dot(x3, wv_ref[...], preferred_element_type=jnp.float32)   # (N, C)

    N, C = q.shape
    D = C // num_heads

    # Per-head attention, heads unrolled inside the kernel (no (B, H) grid).
    ctx_heads = []
    for h in range(num_heads):
        lo, hi = h * D, (h + 1) * D
        qh = q[:, lo:hi]                                                # (N, D)
        kh = k[:, lo:hi]
        vh = v[:, lo:hi]

        s = jnp.dot(qh, kh.T, preferred_element_type=jnp.float32)      # (N, N)
        s = s - jnp.max(s, axis=-1, keepdims=True)                     # stable
        p = jnp.exp(s)
        p = p * pl.reciprocal(jnp.sum(p, axis=-1, keepdims=True), approx=True)
        ctx_heads.append(jnp.dot(p, vh, preferred_element_type=jnp.float32))

    ctx = jnp.concatenate(ctx_heads, axis=-1).astype(x1.dtype)          # (N, C)

    # Output projection (+ bias), single lane-dense (N, C) store.
    out = jnp.dot(ctx, wp_ref[...], preferred_element_type=jnp.float32)
    out = out + bp_ref[...].astype(jnp.float32)
    o_ref[0] = out.astype(o_ref.dtype)


# ---------------------------------------------------------------------------
# Forward wrapper
# ---------------------------------------------------------------------------
def cross_attention(x_1, x_2, x_3, prepared, num_heads):
    """x_*: (B, N, C).  `prepared` comes from prepare_params()."""
    B, N, C = x_1.shape
    kern = functools.partial(_cross_attention_kernel, num_heads=num_heads)

    x_spec = pl.BlockSpec((1, N, C), lambda b: (b, 0, 0))
    w_spec = pl.BlockSpec((C, C), lambda b: (0, 0))
    b_spec = pl.BlockSpec((1, C), lambda b: (0, 0))

    return pl.pallas_call(
        kern,
        out_shape=jax.ShapeDtypeStruct((B, N, C), x_1.dtype),
        grid=(B,),
        in_specs=[x_spec, x_spec, x_spec, w_spec, w_spec, w_spec, w_spec, b_spec],
        out_specs=x_spec,
        compiler_params=pltpu.CompilerParams(
            dimension_semantics=("parallel",)),   # shards B across v7x's 2 TCs
    )(x_1, x_2, x_3,
      prepared["wq_t"], prepared["wk_t"], prepared["wv_t"],
      prepared["wp_t"], prepared["bp"])


# ---------------------------------------------------------------------------
# Parameter init (torch nn.Linear layout: W is (out, in)) and one-time prep:
# pre-transpose weights, fold softmax scale into W_q.
# ---------------------------------------------------------------------------
def init_params(dim, key):
    ks = jax.random.split(key, 4)
    s = 1.0 / (dim ** 0.5)
    return {
        "wq": jax.random.uniform(ks[0], (dim, dim), jnp.float32, -s, s),
        "wk": jax.random.uniform(ks[1], (dim, dim), jnp.float32, -s, s),
        "wv": jax.random.uniform(ks[2], (dim, dim), jnp.float32, -s, s),
        "wp": jax.random.uniform(ks[3], (dim, dim), jnp.float32, -s, s),
        "bp": jnp.zeros((dim,), jnp.float32),
    }


def prepare_params(params, num_heads):
    dim = params["wq"].shape[0]
    head_dim = dim // num_heads
    scale = head_dim ** (-0.5)
    return {
        "wq_t": jnp.transpose(params["wq"]) * scale,   # scale folded into W_q
        "wk_t": jnp.transpose(params["wk"]),
        "wv_t": jnp.transpose(params["wv"]),
        "wp_t": jnp.transpose(params["wp"]),
        "bp":   params["bp"].reshape(1, dim),
    }


# ---------------------------------------------------------------------------
# Pure-JAX reference for verification (mirrors the PyTorch module)
# ---------------------------------------------------------------------------
def reference(x_1, x_2, x_3, params, num_heads):
    B, N, C = x_1.shape
    D = C // num_heads
    scale = D ** (-0.5)

    def split(t):
        return jnp.transpose(t.reshape(B, N, num_heads, D), (0, 2, 1, 3))

    q = split(x_1 @ params["wq"].T)
    k = split(x_2 @ params["wk"].T)
    v = split(x_3 @ params["wv"].T)
    attn = jnp.einsum("bhnd,bhmd->bhnm", q, k) * scale
    attn = jax.nn.softmax(attn, axis=-1)
    o = jnp.einsum("bhnm,bhmd->bhnd", attn, v)
    o = jnp.transpose(o, (0, 2, 1, 3)).reshape(B, N, C)
    return o @ params["wp"].T + params["bp"]


if __name__ == "__main__":
    B, N, C, H = 2, 8, 32, 8   # batch=2, seq=8, dim=32, num_heads=8 (head_dim=4)

    key = jax.random.PRNGKey(0)
    k1, k2, k3, kp = jax.random.split(key, 4)
    x_1 = jax.random.normal(k1, (B, N, C), jnp.float32)
    x_2 = jax.random.normal(k2, (B, N, C), jnp.float32)
    x_3 = jax.random.normal(k3, (B, N, C), jnp.float32)

    params = init_params(C, kp)
    prepared = prepare_params(params, num_heads=H)

    out = cross_attention(x_1, x_2, x_3, prepared, num_heads=H)
    out = jax.block_until_ready(out)

    ref = reference(x_1, x_2, x_3, params, num_heads=H)
    assert out.shape == (B, N, C)
    assert jnp.allclose(out, ref, atol=2e-3, rtol=2e-3), "mismatch vs reference"

    print("KERNEL_OK")
</pallas_src>

<mosaic_0001>
module attributes {stable_mosaic.version = 11 : i64} {
  func.func @_cross_attention_kernel(%arg0: i32, %arg1: memref<1x8x32xf32, #tpu.memory_space<vmem>>, %arg2: memref<1x8x32xf32, #tpu.memory_space<vmem>>, %arg3: memref<1x8x32xf32, #tpu.memory_space<vmem>>, %arg4: memref<32x32xf32, #tpu.memory_space<vmem>>, %arg5: memref<32x32xf32, #tpu.memory_space<vmem>>, %arg6: memref<32x32xf32, #tpu.memory_space<vmem>>, %arg7: memref<32x32xf32, #tpu.memory_space<vmem>>, %arg8: memref<1x32xf32, #tpu.memory_space<vmem>>, %arg9: memref<1x8x32xf32, #tpu.memory_space<vmem>>) attributes {dimension_semantics = [#tpu.dimension_semantics<parallel>], iteration_bounds = array<i64: 2>, scalar_prefetch = 0 : i64, scratch_operands = 0 : i64, tpu.core_type = #tpu.core_type<tc>, window_params = [{transform_indices = @transform_0, window_bounds = array<i64: 1, 8, 32>}, {transform_indices = @transform_1, window_bounds = array<i64: 1, 8, 32>}, {transform_indices = @transform_2, window_bounds = array<i64: 1, 8, 32>}, {pipeline_mode = #tpu.pipeline_mode<synchronous>, transform_indices = @transform_3, window_bounds = array<i64: 32, 32>}, {pipeline_mode = #tpu.pipeline_mode<synchronous>, transform_indices = @transform_4, window_bounds = array<i64: 32, 32>}, {pipeline_mode = #tpu.pipeline_mode<synchronous>, transform_indices = @transform_5, window_bounds = array<i64: 32, 32>}, {pipeline_mode = #tpu.pipeline_mode<synchronous>, transform_indices = @transform_6, window_bounds = array<i64: 32, 32>}, {pipeline_mode = #tpu.pipeline_mode<synchronous>, transform_indices = @transform_7, window_bounds = array<i64: 1, 32>}, {transform_indices = @transform_8, window_bounds = array<i64: 1, 8, 32>}]} {
    %c0 = arith.constant 0 : index
    %c0_0 = arith.constant 0 : index
    %c0_1 = arith.constant 0 : index
    %0 = vector.load %arg1[%c0, %c0_0, %c0_1] : memref<1x8x32xf32, #tpu.memory_space<vmem>>, vector<1x8x32xf32>
    %1 = vector.shape_cast %0 : vector<1x8x32xf32> to vector<8x32xf32>
    %c0_2 = arith.constant 0 : index
    %c0_3 = arith.constant 0 : index
    %c0_4 = arith.constant 0 : index
    %2 = vector.load %arg2[%c0_2, %c0_3, %c0_4] : memref<1x8x32xf32, #tpu.memory_space<vmem>>, vector<1x8x32xf32>
    %3 = vector.shape_cast %2 : vector<1x8x32xf32> to vector<8x32xf32>
    %c0_5 = arith.constant 0 : index
    %c0_6 = arith.constant 0 : index
    %c0_7 = arith.constant 0 : index
    %4 = vector.load %arg3[%c0_5, %c0_6, %c0_7] : memref<1x8x32xf32, #tpu.memory_space<vmem>>, vector<1x8x32xf32>
    %5 = vector.shape_cast %4 : vector<1x8x32xf32> to vector<8x32xf32>
    %c0_8 = arith.constant 0 : index
    %c0_9 = arith.constant 0 : index
    %6 = vector.load %arg4[%c0_8, %c0_9] : memref<32x32xf32, #tpu.memory_space<vmem>>, vector<32x32xf32>
    %cst = arith.constant dense<0.000000e+00> : vector<8x32xf32>
    %7 = tpu.matmul %1, %6, %cst {dimension_numbers = #tpu.dot_dimension_numbers<[1], [0], [0], [1], [0, 0, 1, 1], [], []>} : vector<8x32xf32>, vector<32x32xf32>, vector<8x32xf32> -> vector<8x32xf32>
    %c0_10 = arith.constant 0 : index
    %c0_11 = arith.constant 0 : index
    %8 = vector.load %arg5[%c0_10, %c0_11] : memref<32x32xf32, #tpu.memory_space<vmem>>, vector<32x32xf32>
    %cst_12 = arith.constant dense<0.000000e+00> : vector<8x32xf32>
    %9 = tpu.matmul %3, %8, %cst_12 {dimension_numbers = #tpu.dot_dimension_numbers<[1], [0], [0], [1], [0, 0, 1, 1], [], []>} : vector<8x32xf32>, vector<32x32xf32>, vector<8x32xf32> -> vector<8x32xf32>
    %c0_13 = arith.constant 0 : index
    %c0_14 = arith.constant 0 : index
    %10 = vector.load %arg6[%c0_13, %c0_14] : memref<32x32xf32, #tpu.memory_space<vmem>>, vector<32x32xf32>
    %cst_15 = arith.constant dense<0.000000e+00> : vector<8x32xf32>
    %11 = tpu.matmul %5, %10, %cst_15 {dimension_numbers = #tpu.dot_dimension_numbers<[1], [0], [0], [1], [0, 0, 1, 1], [], []>} : vector<8x32xf32>, vector<32x32xf32>, vector<8x32xf32> -> vector<8x32xf32>
    %12 = vector.extract_strided_slice %7 {offsets = [0, 0], sizes = [8, 4], strides = [1, 1]} : vector<8x32xf32> to vector<8x4xf32>
    %13 = vector.extract_strided_slice %9 {offsets = [0, 0], sizes = [8, 4], strides = [1, 1]} : vector<8x32xf32> to vector<8x4xf32>
    %14 = vector.extract_strided_slice %11 {offsets = [0, 0], sizes = [8, 4], strides = [1, 1]} : vector<8x32xf32> to vector<8x4xf32>
    %15 = tpu.transpose %13, [1, 0] : vector<8x4xf32> -> vector<4x8xf32>
    %cst_16 = arith.constant dense<0.000000e+00> : vector<8x8xf32>
    %16 = tpu.matmul %12, %15, %cst_16 {dimension_numbers = #tpu.dot_dimension_numbers<[1], [0], [0], [1], [0, 0, 1, 1], [], []>} : vector<8x4xf32>, vector<4x8xf32>, vector<8x8xf32> -> vector<8x8xf32>
    %cst_17 = arith.constant dense<0xFF800000> : vector<8xf32>
    %17 = vector.multi_reduction <maximumf>, %16, %cst_17 [1] : vector<8x8xf32> to vector<8xf32>
    %18 = vector.shape_cast %17 : vector<8xf32> to vector<8x1xf32>
    %19 = vector.broadcast %18 : vector<8x1xf32> to vector<8x8xf32>
    %20 = arith.subf %16, %19 : vector<8x8xf32>
    %21 = math.exp %20 : vector<8x8xf32>
    %cst_18 = arith.constant dense<0.000000e+00> : vector<8xf32>
    %22 = vector.multi_reduction <add>, %21, %cst_18 [1] : vector<8x8xf32> to vector<8xf32>
    %23 = vector.shape_cast %22 : vector<8xf32> to vector<8x1xf32>
    %24 = tpu.reciprocal %23 {approx = true} : vector<8x1xf32> -> vector<8x1xf32>
    %25 = vector.broadcast %24 : vector<8x1xf32> to vector<8x8xf32>
    %26 = arith.mulf %21, %25 : vector<8x8xf32>
    %cst_19 = arith.constant dense<0.000000e+00> : vector<8x4xf32>
    %27 = tpu.matmul %26, %14, %cst_19 {dimension_numbers = #tpu.dot_dimension_numbers<[1], [0], [0], [1], [0, 0, 1, 1], [], []>} : vector<8x8xf32>, vector<8x4xf32>, vector<8x4xf32> -> vector<8x4xf32>
    %28 = vector.extract_strided_slice %7 {offsets = [0, 4], sizes = [8, 4], strides = [1, 1]} : vector<8x32xf32> to vector<8x4xf32>
    %29 = vector.extract_strided_slice %9 {offsets = [0, 4], sizes = [8, 4], strides = [1, 1]} : vector<8x32xf32> to vector<8x4xf32>
    %30 = vector.extract_strided_slice %11 {offsets = [0, 4], sizes = [8, 4], strides = [1, 1]} : vector<8x32xf32> to vector<8x4xf32>
    %31 = tpu.transpose %29, [1, 0] : vector<8x4xf32> -> vector<4x8xf32>
    %cst_20 = arith.constant dense<0.000000e+00> : vector<8x8xf32>
    %32 = tpu.matmul %28, %31, %cst_20 {dimension_numbers = #tpu.dot_dimension_numbers<[1], [0], [0], [1], [0, 0, 1, 1], [], []>} : vector<8x4xf32>, vector<4x8xf32>, vector<8x8xf32> -> vector<8x8xf32>
    %cst_21 = arith.constant dense<0xFF800000> : vector<8xf32>
    %33 = vector.multi_reduction <maximumf>, %32, %cst_21 [1] : vector<8x8xf32> to vector<8xf32>
    %34 = vector.shape_cast %33 : vector<8xf32> to vector<8x1xf32>
    %35 = vector.broadcast %34 : vector<8x1xf32> to vector<8x8xf32>
    %36 = arith.subf %32, %35 : vector<8x8xf32>
    %37 = math.exp %36 : vector<8x8xf32>
    %cst_22 = arith.constant dense<0.000000e+00> : vector<8xf32>
    %38 = vector.multi_reduction <add>, %37, %cst_22 [1] : vector<8x8xf32> to vector<8xf32>
    %39 = vector.shape_cast %38 : vector<8xf32> to vector<8x1xf32>
    %40 = tpu.reciprocal %39 {approx = true} : vector<8x1xf32> -> vector<8x1xf32>
    %41 = vector.broadcast %40 : vector<8x1xf32> to vector<8x8xf32>
    %42 = arith.mulf %37, %41 : vector<8x8xf32>
    %cst_23 = arith.constant dense<0.000000e+00> : vector<8x4xf32>
    %43 = tpu.matmul %42, %30, %cst_23 {dimension_numbers = #tpu.dot_dimension_numbers<[1], [0], [0], [1], [0, 0, 1, 1], [], []>} : vector<8x8xf32>, vector<8x4xf32>, vector<8x4xf32> -> vector<8x4xf32>
    %44 = vector.extract_strided_slice %7 {offsets = [0, 8], sizes = [8, 4], strides = [1, 1]} : vector<8x32xf32> to vector<8x4xf32>
    %45 = vector.extract_strided_slice %9 {offsets = [0, 8], sizes = [8, 4], strides = [1, 1]} : vector<8x32xf32> to vector<8x4xf32>
    %46 = vector.extract_strided_slice %11 {offsets = [0, 8], sizes = [8, 4], strides = [1, 1]} : vector<8x32xf32> to vector<8x4xf32>
    %47 = tpu.transpose %45, [1, 0] : vector<8x4xf32> -> vector<4x8xf32>
    %cst_24 = arith.constant dense<0.000000e+00> : vector<8x8xf32>
    %48 = tpu.matmul %44, %47, %cst_24 {dimension_numbers = #tpu.dot_dimension_numbers<[1], [0], [0], [1], [0, 0, 1, 1], [], []>} : vector<8x4xf32>, vector<4x8xf32>, vector<8x8xf32> -> vector<8x8xf32>
    %cst_25 = arith.constant dense<0xFF800000> : vector<8xf32>
    %49 = vector.multi_reduction <maximumf>, %48, %cst_25 [1] : vector<8x8xf32> to vector<8xf32>
    %50 = vector.shape_cast %49 : vector<8xf32> to vector<8x1xf32>
    %51 = vector.broadcast %50 : vector<8x1xf32> to vector<8x8xf32>
    %52 = arith.subf %48, %51 : vector<8x8xf32>
    %53 = math.exp %52 : vector<8x8xf32>
    %cst_26 = arith.constant dense<0.000000e+00> : vector<8xf32>
    %54 = vector.multi_reduction <add>, %53, %cst_26 [1] : vector<8x8xf32> to vector<8xf32>
    %55 = vector.shape_cast %54 : vector<8xf32> to vector<8x1xf32>
    %56 = tpu.reciprocal %55 {approx = true} : vector<8x1xf32> -> vector<8x1xf32>
    %57 = vector.broadcast %56 : vector<8x1xf32> to vector<8x8xf32>
    %58 = arith.mulf %53, %57 : vector<8x8xf32>
    %cst_27 = arith.constant dense<0.000000e+00> : vector<8x4xf32>
    %59 = tpu.matmul %58, %46, %cst_27 {dimension_numbers = #tpu.dot_dimension_numbers<[1], [0], [0], [1], [0, 0, 1, 1], [], []>} : vector<8x8xf32>, vector<8x4xf32>, vector<8x4xf32> -> vector<8x4xf32>
    %60 = vector.extract_strided_slice %7 {offsets = [0, 12], sizes = [8, 4], strides = [1, 1]} : vector<8x32xf32> to vector<8x4xf32>
    %61 = vector.extract_strided_slice %9 {offsets = [0, 12], sizes = [8, 4], strides = [1, 1]} : vector<8x32xf32> to vector<8x4xf32>
    %62 = vector.extract_strided_slice %11 {offsets = [0, 12], sizes = [8, 4], strides = [1, 1]} : vector<8x32xf32> to vector<8x4xf32>
    %63 = tpu.transpose %61, [1, 0] : vector<8x4xf32> -> vector<4x8xf32>
    %cst_28 = arith.constant dense<0.000000e+00> : vector<8x8xf32>
    %64 = tpu.matmul %60, %63, %cst_28 {dimension_numbers = #tpu.dot_dimension_numbers<[1], [0], [0], [1], [0, 0, 1, 1], [], []>} : vector<8x4xf32>, vector<4x8xf32>, vector<8x8xf32> -> vector<8x8xf32>
    %cst_29 = arith.constant dense<0xFF800000> : vector<8xf32>
    %65 = vector.multi_reduction <maximumf>, %64, %cst_29 [1] : vector<8x8xf32> to vector<8xf32>
    %66 = vector.shape_cast %65 : vector<8xf32> to vector<8x1xf32>
    %67 = vector.broadcast %66 : vector<8x1xf32> to vector<8x8xf32>
    %68 = arith.subf %64, %67 : vector<8x8xf32>
    %69 = math.exp %68 : vector<8x8xf32>
    %cst_30 = arith.constant dense<0.000000e+00> : vector<8xf32>
    %70 = vector.multi_reduction <add>, %69, %cst_30 [1] : vector<8x8xf32> to vector<8xf32>
    %71 = vector.shape_cast %70 : vector<8xf32> to vector<8x1xf32>
    %72 = tpu.reciprocal %71 {approx = true} : vector<8x1xf32> -> vector<8x1xf32>
    %73 = vector.broadcast %72 : vector<8x1xf32> to vector<8x8xf32>
    %74 = arith.mulf %69, %73 : vector<8x8xf32>
    %cst_31 = arith.constant dense<0.000000e+00> : vector<8x4xf32>
    %75 = tpu.matmul %74, %62, %cst_31 {dimension_numbers = #tpu.dot_dimension_numbers<[1], [0], [0], [1], [0, 0, 1, 1], [], []>} : vector<8x8xf32>, vector<8x4xf32>, vector<8x4xf32> -> vector<8x4xf32>
    %76 = vector.extract_strided_slice %7 {offsets = [0, 16], sizes = [8, 4], strides = [1, 1]} : vector<8x32xf32> to vector<8x4xf32>
    %77 = vector.extract_strided_slice %9 {offsets = [0, 16], sizes = [8, 4], strides = [1, 1]} : vector<8x32xf32> to vector<8x4xf32>
    %78 = vector.extract_strided_slice %11 {offsets = [0, 16], sizes = [8, 4], strides = [1, 1]} : vector<8x32xf32> to vector<8x4xf32>
    %79 = tpu.transpose %77, [1, 0] : vector<8x4xf32> -> vector<4x8xf32>
    %cst_32 = arith.constant dense<0.000000e+00> : vector<8x8xf32>
    %80 = tpu.matmul %76, %79, %cst_32 {dimension_numbers = #tpu.dot_dimension_numbers<[1], [0], [0], [1], [0, 0, 1, 1], [], []>} : vector<8x4xf32>, vector<4x8xf32>, vector<8x8xf32> -> vector<8x8xf32>
    %cst_33 = arith.constant dense<0xFF800000> : vector<8xf32>
    %81 = vector.multi_reduction <maximumf>, %80, %cst_33 [1] : vector<8x8xf32> to vector<8xf32>
    %82 = vector.shape_cast %81 : vector<8xf32> to vector<8x1xf32>
    %83 = vector.broadcast %82 : vector<8x1xf32> to vector<8x8xf32>
    %84 = arith.subf %80, %83 : vector<8x8xf32>
    %85 = math.exp %84 : vector<8x8xf32>
    %cst_34 = arith.constant dense<0.000000e+00> : vector<8xf32>
    %86 = vector.multi_reduction <add>, %85, %cst_34 [1] : vector<8x8xf32> to vector<8xf32>
    %87 = vector.shape_cast %86 : vector<8xf32> to vector<8x1xf32>
    %88 = tpu.reciprocal %87 {approx = true} : vector<8x1xf32> -> vector<8x1xf32>
    %89 = vector.broadcast %88 : vector<8x1xf32> to vector<8x8xf32>
    %90 = arith.mulf %85, %89 : vector<8x8xf32>
    %cst_35 = arith.constant dense<0.000000e+00> : vector<8x4xf32>
    %91 = tpu.matmul %90, %78, %cst_35 {dimension_numbers = #tpu.dot_dimension_numbers<[1], [0], [0], [1], [0, 0, 1, 1], [], []>} : vector<8x8xf32>, vector<8x4xf32>, vector<8x4xf32> -> vector<8x4xf32>
    %92 = vector.extract_strided_slice %7 {offsets = [0, 20], sizes = [8, 4], strides = [1, 1]} : vector<8x32xf32> to vector<8x4xf32>
    %93 = vector.extract_strided_slice %9 {offsets = [0, 20], sizes = [8, 4], strides = [1, 1]} : vector<8x32xf32> to vector<8x4xf32>
    %94 = vector.extract_strided_slice %11 {offsets = [0, 20], sizes = [8, 4], strides = [1, 1]} : vector<8x32xf32> to vector<8x4xf32>
    %95 = tpu.transpose %93, [1, 0] : vector<8x4xf32> -> vector<4x8xf32>
    %cst_36 = arith.constant dense<0.000000e+00> : vector<8x8xf32>
    %96 = tpu.matmul %92, %95, %cst_36 {dimension_numbers = #tpu.dot_dimension_numbers<[1], [0], [0], [1], [0, 0, 1, 1], [], []>} : vector<8x4xf32>, vector<4x8xf32>, vector<8x8xf32> -> vector<8x8xf32>
    %cst_37 = arith.constant dense<0xFF800000> : vector<8xf32>
    %97 = vector.multi_reduction <maximumf>, %96, %cst_37 [1] : vector<8x8xf32> to vector<8xf32>
    %98 = vector.shape_cast %97 : vector<8xf32> to vector<8x1xf32>
    %99 = vector.broadcast %98 : vector<8x1xf32> to vector<8x8xf32>
    %100 = arith.subf %96, %99 : vector<8x8xf32>
    %101 = math.exp %100 : vector<8x8xf32>
    %cst_38 = arith.constant dense<0.000000e+00> : vector<8xf32>
    %102 = vector.multi_reduction <add>, %101, %cst_38 [1] : vector<8x8xf32> to vector<8xf32>
    %103 = vector.shape_cast %102 : vector<8xf32> to vector<8x1xf32>
    %104 = tpu.reciprocal %103 {approx = true} : vector<8x1xf32> -> vector<8x1xf32>
    %105 = vector.broadcast %104 : vector<8x1xf32> to vector<8x8xf32>
    %106 = arith.mulf %101, %105 : vector<8x8xf32>
    %cst_39 = arith.constant dense<0.000000e+00> : vector<8x4xf32>
    %107 = tpu.matmul %106, %94, %cst_39 {dimension_numbers = #tpu.dot_dimension_numbers<[1], [0], [0], [1], [0, 0, 1, 1], [], []>} : vector<8x8xf32>, vector<8x4xf32>, vector<8x4xf32> -> vector<8x4xf32>
    %108 = vector.extract_strided_slice %7 {offsets = [0, 24], sizes = [8, 4], strides = [1, 1]} : vector<8x32xf32> to vector<8x4xf32>
    %109 = vector.extract_strided_slice %9 {offsets = [0, 24], sizes = [8, 4], strides = [1, 1]} : vector<8x32xf32> to vector<8x4xf32>
    %110 = vector.extract_strided_slice %11 {offsets = [0, 24], sizes = [8, 4], strides = [1, 1]} : vector<8x32xf32> to vector<8x4xf32>
    %111 = tpu.transpose %109, [1, 0] : vector<8x4xf32> -> vector<4x8xf32>
    %cst_40 = arith.constant dense<0.000000e+00> : vector<8x8xf32>
    %112 = tpu.matmul %108, %111, %cst_40 {dimension_numbers = #tpu.dot_dimension_numbers<[1], [0], [0], [1], [0, 0, 1, 1], [], []>} : vector<8x4xf32>, vector<4x8xf32>, vector<8x8xf32> -> vector<8x8xf32>
    %cst_41 = arith.constant dense<0xFF800000> : vector<8xf32>
    %113 = vector.multi_reduction <maximumf>, %112, %cst_41 [1] : vector<8x8xf32> to vector<8xf32>
    %114 = vector.shape_cast %113 : vector<8xf32> to vector<8x1xf32>
    %115 = vector.broadcast %114 : vector<8x1xf32> to vector<8x8xf32>
    %116 = arith.subf %112, %115 : vector<8x8xf32>
    %117 = math.exp %116 : vector<8x8xf32>
    %cst_42 = arith.constant dense<0.000000e+00> : vector<8xf32>
    %118 = vector.multi_reduction <add>, %117, %cst_42 [1] : vector<8x8xf32> to vector<8xf32>
    %119 = vector.shape_cast %118 : vector<8xf32> to vector<8x1xf32>
    %120 = tpu.reciprocal %119 {approx = true} : vector<8x1xf32> -> vector<8x1xf32>
    %121 = vector.broadcast %120 : vector<8x1xf32> to vector<8x8xf32>
    %122 = arith.mulf %117, %121 : vector<8x8xf32>
    %cst_43 = arith.constant dense<0.000000e+00> : vector<8x4xf32>
    %123 = tpu.matmul %122, %110, %cst_43 {dimension_numbers = #tpu.dot_dimension_numbers<[1], [0], [0], [1], [0, 0, 1, 1], [], []>} : vector<8x8xf32>, vector<8x4xf32>, vector<8x4xf32> -> vector<8x4xf32>
    %124 = vector.extract_strided_slice %7 {offsets = [0, 28], sizes = [8, 4], strides = [1, 1]} : vector<8x32xf32> to vector<8x4xf32>
    %125 = vector.extract_strided_slice %9 {offsets = [0, 28], sizes = [8, 4], strides = [1, 1]} : vector<8x32xf32> to vector<8x4xf32>
    %126 = vector.extract_strided_slice %11 {offsets = [0, 28], sizes = [8, 4], strides = [1, 1]} : vector<8x32xf32> to vector<8x4xf32>
    %127 = tpu.transpose %125, [1, 0] : vector<8x4xf32> -> vector<4x8xf32>
    %cst_44 = arith.constant dense<0.000000e+00> : vector<8x8xf32>
    %128 = tpu.matmul %124, %127, %cst_44 {dimension_numbers = #tpu.dot_dimension_numbers<[1], [0], [0], [1], [0, 0, 1, 1], [], []>} : vector<8x4xf32>, vector<4x8xf32>, vector<8x8xf32> -> vector<8x8xf32>
    %cst_45 = arith.constant dense<0xFF800000> : vector<8xf32>
    %129 = vector.multi_reduction <maximumf>, %128, %cst_45 [1] : vector<8x8xf32> to vector<8xf32>
    %130 = vector.shape_cast %129 : vector<8xf32> to vector<8x1xf32>
    %131 = vector.broadcast %130 : vector<8x1xf32> to vector<8x8xf32>
    %132 = arith.subf %128, %131 : vector<8x8xf32>
    %133 = math.exp %132 : vector<8x8xf32>
    %cst_46 = arith.constant dense<0.000000e+00> : vector<8xf32>
    %134 = vector.multi_reduction <add>, %133, %cst_46 [1] : vector<8x8xf32> to vector<8xf32>
    %135 = vector.shape_cast %134 : vector<8xf32> to vector<8x1xf32>
    %136 = tpu.reciprocal %135 {approx = true} : vector<8x1xf32> -> vector<8x1xf32>
    %137 = vector.broadcast %136 : vector<8x1xf32> to vector<8x8xf32>
    %138 = arith.mulf %133, %137 : vector<8x8xf32>
    %cst_47 = arith.constant dense<0.000000e+00> : vector<8x4xf32>
    %139 = tpu.matmul %138, %126, %cst_47 {dimension_numbers = #tpu.dot_dimension_numbers<[1], [0], [0], [1], [0, 0, 1, 1], [], []>} : vector<8x8xf32>, vector<8x4xf32>, vector<8x4xf32> -> vector<8x4xf32>
    %140 = tpu.concatenate %27, %43, %59, %75, %91, %107, %123, %139 in 1 : vector<8x4xf32>, vector<8x4xf32>, vector<8x4xf32>, vector<8x4xf32>, vector<8x4xf32>, vector<8x4xf32>, vector<8x4xf32>, vector<8x4xf32> -> vector<8x32xf32>
    %c0_48 = arith.constant 0 : index
    %c0_49 = arith.constant 0 : index
    %141 = vector.load %arg7[%c0_48, %c0_49] : memref<32x32xf32, #tpu.memory_space<vmem>>, vector<32x32xf32>
    %cst_50 = arith.constant dense<0.000000e+00> : vector<8x32xf32>
    %142 = tpu.matmul %140, %141, %cst_50 {dimension_numbers = #tpu.dot_dimension_numbers<[1], [0], [0], [1], [0, 0, 1, 1], [], []>} : vector<8x32xf32>, vector<32x32xf32>, vector<8x32xf32> -> vector<8x32xf32>
    %c0_51 = arith.constant 0 : index
    %c0_52 = arith.constant 0 : index
    %143 = vector.load %arg8[%c0_51, %c0_52] : memref<1x32xf32, #tpu.memory_space<vmem>>, vector<1x32xf32>
    %144 = vector.broadcast %143 : vector<1x32xf32> to vector<8x32xf32>
    %145 = arith.addf %142, %144 : vector<8x32xf32>
    %c0_53 = arith.constant 0 : index
    %c0_54 = arith.constant 0 : index
    %c0_55 = arith.constant 0 : index
    %146 = vector.load %arg9[%c0_53, %c0_54, %c0_55] : memref<1x8x32xf32, #tpu.memory_space<vmem>>, vector<1x8x32xf32>
    %147 = vector.shape_cast %146 : vector<1x8x32xf32> to vector<8x32xf32>
    %148 = vector.shape_cast %145 : vector<8x32xf32> to vector<1x8x32xf32>
    tpu.vector_store %arg9[%c0_53, %c0_54, %c0_55], %148 {strides = array<i32>} : memref<1x8x32xf32, #tpu.memory_space<vmem>>, vector<1x8x32xf32>,
    return
  }
  func.func @transform_0(%arg0: i32) -> (i32, i32, i32) {
    %c0_i32 = arith.constant 0 : i32
    %c0_i32_0 = arith.constant 0 : i32
    %c0_i32_1 = arith.constant 0 : i32
    return %arg0, %c0_i32, %c0_i32_0 : i32, i32, i32
  }
  func.func @transform_1(%arg0: i32) -> (i32, i32, i32) {
    %c0_i32 = arith.constant 0 : i32
    %c0_i32_0 = arith.constant 0 : i32
    %c0_i32_1 = arith.constant 0 : i32
    return %arg0, %c0_i32, %c0_i32_0 : i32, i32, i32
  }
  func.func @transform_2(%arg0: i32) -> (i32, i32, i32) {
    %c0_i32 = arith.constant 0 : i32
    %c0_i32_0 = arith.constant 0 : i32
    %c0_i32_1 = arith.constant 0 : i32
    return %arg0, %c0_i32, %c0_i32_0 : i32, i32, i32
  }
  func.func @transform_3(%arg0: i32) -> (i32, i32) {
    %c0_i32 = arith.constant 0 : i32
    %c0_i32_0 = arith.constant 0 : i32
    %c0_i32_1 = arith.constant 0 : i32
    return %c0_i32, %c0_i32_0 : i32, i32
  }
  func.func @transform_4(%arg0: i32) -> (i32, i32) {
    %c0_i32 = arith.constant 0 : i32
    %c0_i32_0 = arith.constant 0 : i32
    %c0_i32_1 = arith.constant 0 : i32
    return %c0_i32, %c0_i32_0 : i32, i32
  }
  func.func @transform_5(%arg0: i32) -> (i32, i32) {
    %c0_i32 = arith.constant 0 : i32
    %c0_i32_0 = arith.constant 0 : i32
    %c0_i32_1 = arith.constant 0 : i32
    return %c0_i32, %c0_i32_0 : i32, i32
  }
  func.func @transform_6(%arg0: i32) -> (i32, i32) {
    %c0_i32 = arith.constant 0 : i32
    %c0_i32_0 = arith.constant 0 : i32
    %c0_i32_1 = arith.constant 0 : i32
    return %c0_i32, %c0_i32_0 : i32, i32
  }
  func.func @transform_7(%arg0: i32) -> (i32, i32) {
    %c0_i32 = arith.constant 0 : i32
    %c0_i32_0 = arith.constant 0 : i32
    %c0_i32_1 = arith.constant 0 : i32
    return %c0_i32, %c0_i32_0 : i32, i32
  }
  func.func @transform_8(%arg0: i32) -> (i32, i32, i32) {
    %c0_i32 = arith.constant 0 : i32
    %c0_i32_0 = arith.constant 0 : i32
    %c0_i32_1 = arith.constant 0 : i32
    return %arg0, %c0_i32, %c0_i32_0 : i32, i32, i32
  }
}

</mosaic_0001>

<llo_original>
// kernel: tpu_custom_call.1
$region0: #{tpu_custom_call.1}
  #allocation0 [shape = 'u32[]', space=smem, size = 0x4, offset = 0x4, fixed_abs, tag = 'smem constant byte address 0x4 - core index']
  #allocation1 [shape = 'u32[144,128]{1,0:T(1,128)}', space=vmem, size = 0x12000, scoped, tag = 'internal scratch']
  %s0 = inlined_call_operand.hbm [shape: f32[2,8,32], index: 0, kind: input, shape index: {}]
  %s1 = inlined_call_operand.hbm [shape: f32[2,8,32], index: 1, kind: input, shape index: {}]
  %s2 = inlined_call_operand.hbm [shape: f32[2,8,32], index: 2, kind: input, shape index: {}]
  %s3 = inlined_call_operand.hbm [shape: f32[32,32], index: 3, kind: input, shape index: {}]
  %s4 = inlined_call_operand.hbm [shape: f32[32,32], index: 4, kind: input, shape index: {}]
  %s5 = inlined_call_operand.hbm [shape: f32[32,32], index: 5, kind: input, shape index: {}]
  %s6 = inlined_call_operand.hbm [shape: f32[32,32], index: 6, kind: input, shape index: {}]
  %s7 = inlined_call_operand.vmem [shape: f32[1,32], index: 7, kind: input, shape index: {}]
  %s8 = inlined_call_operand.hbm [shape: f32[2,8,32], index: 8, kind: output, shape index: {}]
  %s9 = sld [smem:[#allocation0]]
  $region93: #{tpu_custom_call.1} parent=0
    _
  %s11 = ssub.s32 1, %s9
  %s12 = scalar_select 0, %s11, %s9
  $region1: #{tpu_custom_call.1} parent=0
    #allocation2 [shape = 'u8[8192]{0}', space=vmem, size = 0x2000, scoped, tag = 'input window, operand 0']
    #allocation3 [shape = 's32[2]{0}', space=sflag, size = 0x8, scoped, tag = 'scoped memory for tpu_custom_call.1']
    #allocation4 [shape = 's32[2]{0}', space=sflag, size = 0x8, scoped, tag = 'scoped memory for tpu_custom_call.1']
    #allocation5 [shape = 'u8[8192]{0}', space=vmem, size = 0x2000, scoped, tag = 'input window, operand 1']
    #allocation6 [shape = 's32[2]{0}', space=sflag, size = 0x8, scoped, tag = 'scoped memory for tpu_custom_call.1']
    #allocation7 [shape = 'u8[8192]{0}', space=vmem, size = 0x2000, scoped, tag = 'input window, operand 2']
    #allocation8 [shape = 'u8[16384]{0}', space=vmem, size = 0x4000, scoped, tag = 'input window, operand 3, single buffered']
    #allocation9 [shape = 's32[1]{0}', space=sflag, size = 0x4, scoped, tag = 'scoped memory for tpu_custom_call.1']
    #allocation10 [shape = 'u8[16384]{0}', space=vmem, size = 0x4000, scoped, tag = 'input window, operand 4, single buffered']
    #allocation11 [shape = 'u8[16384]{0}', space=vmem, size = 0x4000, scoped, tag = 'input window, operand 5, single buffered']
    #allocation12 [shape = 's32[1]{0}', space=sflag, size = 0x4, scoped, tag = 'scoped memory for tpu_custom_call.1']
    #allocation13 [shape = 'u8[16384]{0}', space=vmem, size = 0x4000, scoped, tag = 'input window, operand 6, single buffered']
    #allocation14 [shape = 'u8[8192]{0}', space=vmem, size = 0x2000, scoped, tag = 'output window, operand 0']
    %13 = vsyncpa [#allocation3], 0
    %s14 = scalar_lea.sflag [#allocation3], 1
    %15 = vsyncpa %s14, 0
    %16 = vsyncpa [#allocation6], 0
    %s17 = scalar_lea.sflag [#allocation6], 1
    %18 = vsyncpa %s17, 0
    %19 = vsyncpa [#allocation9], 0
    %20 = vsyncpa [#allocation12], 0
    %21 = vsyncpa [#allocation4], 0
    %s22 = scalar_lea.sflag [#allocation4], 1
    %23 = vsyncpa %s22, 0
    loop: start=0, step=1, limit=4
    $region2: #{tpu_custom_call.1} parent=1 // loop_pre_header
      _
    $region3: #{tpu_custom_call.1} parent=1 // loop_header
      %s25 = sphi 0, %s29
      %p26 = scmp.ge.s32.totalorder %s25, 4
      %s35 = sphi 0, %s37
      %s38 = sphi 0, %s35
      %s39 = sphi 0, %s38
      %s55 = sphi 0, %s39
      %s61 = sphi 0, %s63
      %s64 = sphi 0, %s61
      %s65 = sphi 0, %s64
      %s81 = sphi 0, %s65
      %s87 = sphi 0, %s89
      %s90 = sphi 0, %s87
      %s91 = sphi 0, %s90
      %s107 = sphi 0, %s91
      %s111 = sphi 0, %s111
      %s113 = sphi 0, %s111
      %s114 = sphi 0, %s113
      %s128 = sphi 0, %s114
      %s132 = sphi 0, %s132
      %s134 = sphi 0, %s132
      %s135 = sphi 0, %s134
      %s149 = sphi 0, %s135
      %s153 = sphi 0, %s153
      %s155 = sphi 0, %s153
      %s156 = sphi 0, %s155
      %s170 = sphi 0, %s156
      %s174 = sphi 0, %s174
      %s176 = sphi 0, %s174
      %s177 = sphi 0, %s176
      %s191 = sphi 0, %s177
      %s195 = sphi 0, %s195
      %s197 = sphi 0, %s195
      %s198 = sphi 0, %s197
      %s212 = sphi 0, %s198
      %s218 = sphi 0, %s220
      %s221 = sphi 0, %s218
      %s222 = sphi 0, %s221
      %s238 = sphi 0, %s222
    $region4: #{tpu_custom_call.1} parent=1 // loop_header_branch
      %28 = sbr.rel (%p26) target = $region8
    $region5: #{tpu_custom_call.1} parent=1 // loop_body
      %s30 = ssub.s32 %s25, 1
      %s31 = ssub.s32 %s25, 2
      %s32 = sadd.s32 %s25, 1
      %s33 = ssub.s32 %s25, %s32
      %p34 = scmp.eq.s32.totalorder %s33, 0
      %s36 = sadd.s32 %s35, 1
      %s37 = scalar_select %p34, %s35, %s36
      %p40 = pneg %p34
      %p41 = scmp.eq.s32.totalorder %s25, 1
      %p42 = por %p40, %p41
      %p43 = scmp.ne.s32.totalorder %s35, %s38
      %p44 = scmp.eq.s32.totalorder %s25, 0
      %p45 = por %p43, %p44
      %p46 = scmp.ne.s32.totalorder %s35, %s38
      %p47 = scmp.eq.s32.totalorder %s30, 1
      %p48 = por %p46, %p47
      %p49 = scmp.ne.s32.totalorder %s38, %s39
      %p50 = scmp.eq.s32.totalorder %s30, 0
      %p51 = por %p49, %p50
      %p52 = scmp.ne.s32.totalorder %s38, %s39
      %p53 = scmp.eq.s32.totalorder %s31, 1
      %p54 = por %p52, %p53
      %p56 = scmp.ne.s32.totalorder %s39, %s55
      %p57 = scmp.eq.s32.totalorder %s31, 0
      %p58 = por %p56, %p57
      %s59 = ssub.s32 %s25, %s32
      %p60 = scmp.eq.s32.totalorder %s59, 0
      %s62 = sadd.s32 %s61, 1
      %s63 = scalar_select %p60, %s61, %s62
      %p66 = pneg %p60
      %p67 = scmp.eq.s32.totalorder %s25, 1
      %p68 = por %p66, %p67
      %p69 = scmp.ne.s32.totalorder %s61, %s64
      %p70 = scmp.eq.s32.totalorder %s25, 0
      %p71 = por %p69, %p70
      %p72 = scmp.ne.s32.totalorder %s61, %s64
      %p73 = scmp.eq.s32.totalorder %s30, 1
      %p74 = por %p72, %p73
      %p75 = scmp.ne.s32.totalorder %s64, %s65
      %p76 = scmp.eq.s32.totalorder %s30, 0
      %p77 = por %p75, %p76
      %p78 = scmp.ne.s32.totalorder %s64, %s65
      %p79 = scmp.eq.s32.totalorder %s31, 1
      %p80 = por %p78, %p79
      %p82 = scmp.ne.s32.totalorder %s65, %s81
      %p83 = scmp.eq.s32.totalorder %s31, 0
      %p84 = por %p82, %p83
      %s85 = ssub.s32 %s25, %s32
      %p86 = scmp.eq.s32.totalorder %s85, 0
      %s88 = sadd.s32 %s87, 1
      %s89 = scalar_select %p86, %s87, %s88
      %p92 = pneg %p86
      %p93 = scmp.eq.s32.totalorder %s25, 1
      %p94 = por %p92, %p93
      %p95 = scmp.ne.s32.totalorder %s87, %s90
      %p96 = scmp.eq.s32.totalorder %s25, 0
      %p97 = por %p95, %p96
      %p98 = scmp.ne.s32.totalorder %s87, %s90
      %p99 = scmp.eq.s32.totalorder %s30, 1
      %p100 = por %p98, %p99
      %p101 = scmp.ne.s32.totalorder %s90, %s91
      %p102 = scmp.eq.s32.totalorder %s30, 0
      %p103 = por %p101, %p102
      %p104 = scmp.ne.s32.totalorder %s90, %s91
      %p105 = scmp.eq.s32.totalorder %s31, 1
      %p106 = por %p104, %p105
      %p108 = scmp.ne.s32.totalorder %s91, %s107
      %p109 = scmp.eq.s32.totalorder %s31, 0
      %p110 = por %p108, %p109
      %s112 = sadd.s32 %s111, 1
      %p115 = scmp.eq.s32.totalorder %s25, 1
      %p116 = scmp.ne.s32.totalorder %s111, %s113
      %p117 = scmp.eq.s32.totalorder %s25, 0
      %p118 = por %p116, %p117
      %p119 = scmp.ne.s32.totalorder %s111, %s113
      %p120 = scmp.eq.s32.totalorder %s30, 1
      %p121 = por %p119, %p120
      %p122 = scmp.ne.s32.totalorder %s113, %s114
      %p123 = scmp.eq.s32.totalorder %s30, 0
      %p124 = por %p122, %p123
      %p125 = scmp.ne.s32.totalorder %s113, %s114
      %p126 = scmp.eq.s32.totalorder %s31, 1
      %p127 = por %p125, %p126
      %p129 = scmp.ne.s32.totalorder %s114, %s128
      %p130 = scmp.eq.s32.totalorder %s31, 0
      %p131 = por %p129, %p130
      %s133 = sadd.s32 %s132, 1
      %p136 = scmp.eq.s32.totalorder %s25, 1
      %p137 = scmp.ne.s32.totalorder %s132, %s134
      %p138 = scmp.eq.s32.totalorder %s25, 0
      %p139 = por %p137, %p138
      %p140 = scmp.ne.s32.totalorder %s132, %s134
      %p141 = scmp.eq.s32.totalorder %s30, 1
      %p142 = por %p140, %p141
      %p143 = scmp.ne.s32.totalorder %s134, %s135
      %p144 = scmp.eq.s32.totalorder %s30, 0
      %p145 = por %p143, %p144
      %p146 = scmp.ne.s32.totalorder %s134, %s135
      %p147 = scmp.eq.s32.totalorder %s31, 1
      %p148 = por %p146, %p147
      %p150 = scmp.ne.s32.totalorder %s135, %s149
      %p151 = scmp.eq.s32.totalorder %s31, 0
      %p152 = por %p150, %p151
      %s154 = sadd.s32 %s153, 1
      %p157 = scmp.eq.s32.totalorder %s25, 1
      %p158 = scmp.ne.s32.totalorder %s153, %s155
      %p159 = scmp.eq.s32.totalorder %s25, 0
      %p160 = por %p158, %p159
      %p161 = scmp.ne.s32.totalorder %s153, %s155
      %p162 = scmp.eq.s32.totalorder %s30, 1
      %p163 = por %p161, %p162
      %p164 = scmp.ne.s32.totalorder %s155, %s156
      %p165 = scmp.eq.s32.totalorder %s30, 0
      %p166 = por %p164, %p165
      %p167 = scmp.ne.s32.totalorder %s155, %s156
      %p168 = scmp.eq.s32.totalorder %s31, 1
      %p169 = por %p167, %p168
      %p171 = scmp.ne.s32.totalorder %s156, %s170
      %p172 = scmp.eq.s32.totalorder %s31, 0
      %p173 = por %p171, %p172
      %s175 = sadd.s32 %s174, 1
      %p178 = scmp.eq.s32.totalorder %s25, 1
      %p179 = scmp.ne.s32.totalorder %s174, %s176
      %p180 = scmp.eq.s32.totalorder %s25, 0
      %p181 = por %p179, %p180
      %p182 = scmp.ne.s32.totalorder %s174, %s176
      %p183 = scmp.eq.s32.totalorder %s30, 1
      %p184 = por %p182, %p183
      %p185 = scmp.ne.s32.totalorder %s176, %s177
      %p186 = scmp.eq.s32.totalorder %s30, 0
      %p187 = por %p185, %p186
      %p188 = scmp.ne.s32.totalorder %s176, %s177
      %p189 = scmp.eq.s32.totalorder %s31, 1
      %p190 = por %p188, %p189
      %p192 = scmp.ne.s32.totalorder %s177, %s191
      %p193 = scmp.eq.s32.totalorder %s31, 0
      %p194 = por %p192, %p193
      %s196 = sadd.s32 %s195, 1
      %p199 = scmp.eq.s32.totalorder %s25, 1
      %p200 = scmp.ne.s32.totalorder %s195, %s197
      %p201 = scmp.eq.s32.totalorder %s25, 0
      %p202 = por %p200, %p201
      %p203 = scmp.ne.s32.totalorder %s195, %s197
      %p204 = scmp.eq.s32.totalorder %s30, 1
      %p205 = por %p203, %p204
      %p206 = scmp.ne.s32.totalorder %s197, %s198
      %p207 = scmp.eq.s32.totalorder %s30, 0
      %p208 = por %p206, %p207
      %p209 = scmp.ne.s32.totalorder %s197, %s198
      %p210 = scmp.eq.s32.totalorder %s31, 1
      %p211 = por %p209, %p210
      %p213 = scmp.ne.s32.totalorder %s198, %s212
      %p214 = scmp.eq.s32.totalorder %s31, 0
      %p215 = por %p213, %p214
      %s216 = ssub.s32 %s25, %s32
      %p217 = scmp.eq.s32.totalorder %s216, 0
      %s219 = sadd.s32 %s218, 1
      %s220 = scalar_select %p217, %s218, %s219
      %p223 = pneg %p217
      %p224 = scmp.eq.s32.totalorder %s25, 1
      %p225 = por %p223, %p224
      %p226 = scmp.ne.s32.totalorder %s218, %s221
      %p227 = scmp.eq.s32.totalorder %s25, 0
      %p228 = por %p226, %p227
      %p229 = scmp.ne.s32.totalorder %s218, %s221
      %p230 = scmp.eq.s32.totalorder %s30, 1
      %p231 = por %p229, %p230
      %p232 = scmp.ne.s32.totalorder %s221, %s222
      %p233 = scmp.eq.s32.totalorder %s30, 0
      %p234 = por %p232, %p233
      %p235 = scmp.ne.s32.totalorder %s221, %s222
      %p236 = scmp.eq.s32.totalorder %s31, 1
      %p237 = por %p235, %p236
      %p239 = scmp.ne.s32.totalorder %s222, %s238
      %p240 = scmp.eq.s32.totalorder %s31, 0
      %p241 = por %p239, %p240
      %p242 = scmp.le.s32.totalorder 1, %s25
      %p243 = scmp.lt.s32.totalorder %s25, 3
      %p244 = pnand %p242, %p243
      %p245 = pneg %p244
      // Predicated region
      $region9: #{tpu_custom_call.1} parent=5 // pred_check
        _
      $region10: #{tpu_custom_call.1} parent=5 // pred_check_branch
        %247 = sbr.rel (%p244) target = $region12
      $region11: #{tpu_custom_call.1} parent=5 // pred_region
        %s248 = ssub.s32 %s25, 1
        // Predicated region
        $region13: #{tpu_custom_call.1} parent=11 // pred_check
          %p249 = pneg %p124
        $region14: #{tpu_custom_call.1} parent=11 // pred_check_branch
          %251 = sbr.rel (%p249) target = $region16
        $region15: #{tpu_custom_call.1} parent=11 // pred_region
          %s253 = ssub.s32 512, 512
          %254 = vsyncadd [#allocation9], %s253
          %s255 = sshll.u32 [#allocation8], 4
          %s256 = int_to_ptr.vmem [resolvable:$true] %s255
          %261 = dma.hbm_to_vmem [thread:$0]  %s3, 512, %s256, [#allocation9], 128, 128, 8
        $region16: #{tpu_custom_call.1} parent=11 // pred_fallthru
          _
        // Predicated region
        $region17: #{tpu_custom_call.1} parent=11 // pred_check
          %p262 = pneg %p145
        $region18: #{tpu_custom_call.1} parent=11 // pred_check_branch
          %264 = sbr.rel (%p262) target = $region20
        $region19: #{tpu_custom_call.1} parent=11 // pred_region
          %s266 = ssub.s32 512, 512
          %267 = vsyncadd [#allocation9], %s266
          %s268 = sshll.u32 [#allocation10], 4
          %s269 = int_to_ptr.vmem [resolvable:$true] %s268
          %274 = dma.hbm_to_vmem [thread:$0]  %s4, 512, %s269, [#allocation9], 128, 128, 8
        $region20: #{tpu_custom_call.1} parent=11 // pred_fallthru
          _
        // Predicated region
        $region21: #{tpu_custom_call.1} parent=11 // pred_check
          %p275 = pneg %p166
        $region22: #{tpu_custom_call.1} parent=11 // pred_check_branch
          %277 = sbr.rel (%p275) target = $region24
        $region23: #{tpu_custom_call.1} parent=11 // pred_region
          %s279 = ssub.s32 512, 512
          %280 = vsyncadd [#allocation12], %s279
          %s281 = sshll.u32 [#allocation11], 4
          %s282 = int_to_ptr.vmem [resolvable:$true] %s281
          %287 = dma.hbm_to_vmem [thread:$0]  %s5, 512, %s282, [#allocation12], 128, 128, 8
        $region24: #{tpu_custom_call.1} parent=11 // pred_fallthru
          _
        // Predicated region
        $region25: #{tpu_custom_call.1} parent=11 // pred_check
          %p288 = pneg %p187
        $region26: #{tpu_custom_call.1} parent=11 // pred_check_branch
          %290 = sbr.rel (%p288) target = $region28
        $region27: #{tpu_custom_call.1} parent=11 // pred_region
          %s292 = ssub.s32 512, 512
          %293 = vsyncadd [#allocation12], %s292
          %s294 = sshll.u32 [#allocation13], 4
          %s295 = int_to_ptr.vmem [resolvable:$true] %s294
          %300 = dma.hbm_to_vmem [thread:$0]  %s6, 512, %s295, [#allocation12], 128, 128, 8
        $region28: #{tpu_custom_call.1} parent=11 // pred_fallthru
          _
        // Predicated region
        $region29: #{tpu_custom_call.1} parent=11 // pred_check
          %p301 = pneg %p208
        $region30: #{tpu_custom_call.1} parent=11 // pred_check_branch
          %303 = sbr.rel (%p301) target = $region32
        $region31: #{tpu_custom_call.1} parent=11 // pred_region
          _
        $region32: #{tpu_custom_call.1} parent=11 // pred_fallthru
          _
      $region12: #{tpu_custom_call.1} parent=5 // pred_fallthru
        _
      %p304 = scmp.lt.s32.totalorder %s25, 2
      // Predicated region
      $region33: #{tpu_custom_call.1} parent=5 // pred_check
        %p305 = pneg %p304
      $region34: #{tpu_custom_call.1} parent=5 // pred_check_branch
        %307 = sbr.rel (%p305) target = $region36
      $region35: #{tpu_custom_call.1} parent=5 // pred_region
        // Predicated region
        $region37: #{tpu_custom_call.1} parent=35 // pred_check
          %p308 = pneg %p45
        $region38: #{tpu_custom_call.1} parent=35 // pred_check_branch
          %310 = sbr.rel (%p308) target = $region40
        $region39: #{tpu_custom_call.1} parent=35 // pred_region
          %s311 = sand.u32 %s35, 1
          %s312 = scalar_lea.sflag [#allocation3], %s311
          %s313 = sand.u32 %s35, 1
          %s314 = smul.addr %s313, 8
          %s315 = scalar_lea.vmem [#allocation2], %s314
          %s317 = ssub.s32 128, 128
          %318 = vsyncadd %s312, %s317
          %s319 = smul.addr %s25, 128
          %s320 = scalar_lea.hbm %s0, %s319
          %s322 = sshll.u32 %s315, 4
          %s323 = int_to_ptr.vmem [resolvable:$true] %s322
          %325 = dma.hbm_to_vmem [thread:$0]  %s320, 128, %s323, %s312
        $region40: #{tpu_custom_call.1} parent=35 // pred_fallthru
          _
        // Predicated region
        $region41: #{tpu_custom_call.1} parent=35 // pred_check
          %p326 = pneg %p71
        $region42: #{tpu_custom_call.1} parent=35 // pred_check_branch
          %328 = sbr.rel (%p326) target = $region44
        $region43: #{tpu_custom_call.1} parent=35 // pred_region
          %s329 = sand.u32 %s25, 1
          %s330 = scalar_lea.sflag [#allocation6], %s329
          %s331 = sand.u32 %s61, 1
          %s332 = smul.addr %s331, 8
          %s333 = scalar_lea.vmem [#allocation5], %s332
          %s335 = ssub.s32 128, 128
          %336 = vsyncadd %s330, %s335
          %s337 = smul.addr %s25, 128
          %s338 = scalar_lea.hbm %s1, %s337
          %s340 = sshll.u32 %s333, 4
          %s341 = int_to_ptr.vmem [resolvable:$true] %s340
          %343 = dma.hbm_to_vmem [thread:$0]  %s338, 128, %s341, %s330
        $region44: #{tpu_custom_call.1} parent=35 // pred_fallthru
          _
        // Predicated region
        $region45: #{tpu_custom_call.1} parent=35 // pred_check
          %p344 = pneg %p97
        $region46: #{tpu_custom_call.1} parent=35 // pred_check_branch
          %346 = sbr.rel (%p344) target = $region48
        $region47: #{tpu_custom_call.1} parent=35 // pred_region
          %s347 = sand.u32 %s25, 1
          %s348 = scalar_lea.sflag [#allocation6], %s347
          %s349 = sand.u32 %s87, 1
          %s350 = smul.addr %s349, 8
          %s351 = scalar_lea.vmem [#allocation7], %s350
          %s353 = ssub.s32 128, 128
          %354 = vsyncadd %s348, %s353
          %s355 = smul.addr %s25, 128
          %s356 = scalar_lea.hbm %s2, %s355
          %s358 = sshll.u32 %s351, 4
          %s359 = int_to_ptr.vmem [resolvable:$true] %s358
          %361 = dma.hbm_to_vmem [thread:$0]  %s356, 128, %s359, %s348
        $region48: #{tpu_custom_call.1} parent=35 // pred_fallthru
          _
      $region36: #{tpu_custom_call.1} parent=5 // pred_fallthru
        _
      %p362 = scmp.le.s32.totalorder 1, %s25
      %p363 = scmp.lt.s32.totalorder %s25, 3
      %p364 = pnand %p362, %p363
      %p365 = pneg %p364
      // Predicated region
      $region49: #{tpu_custom_call.1} parent=5 // pred_check
        _
      $region50: #{tpu_custom_call.1} parent=5 // pred_check_branch
        %367 = sbr.rel (%p364) target = $region52
      $region51: #{tpu_custom_call.1} parent=5 // pred_region
        %s368 = ssub.s32 %s25, 1
        %s369 = sand.u32 %s38, 1
        %s370 = scalar_lea.sflag [#allocation3], %s369
        %s371 = sand.u32 %s38, 1
        %s372 = smul.addr %s371, 8
        %s373 = scalar_lea.vmem [#allocation2], %s372
        // Predicated region
        $region53: #{tpu_custom_call.1} parent=51 // pred_check
          %p374 = pneg %p51
        $region54: #{tpu_custom_call.1} parent=51 // pred_check_branch
          %376 = sbr.rel (%p374) target = $region56
        $region55: #{tpu_custom_call.1} parent=51 // pred_region
          %377 = dma.done %s370, 128
        $region56: #{tpu_custom_call.1} parent=51 // pred_fallthru
          _
        %s378 = sand.u32 %s30, 1
        %s379 = scalar_lea.sflag [#allocation6], %s378
        %s380 = sand.u32 %s64, 1
        %s381 = smul.addr %s380, 8
        %s382 = scalar_lea.vmem [#allocation5], %s381
        // Predicated region
        $region57: #{tpu_custom_call.1} parent=51 // pred_check
          %p383 = pneg %p77
        $region58: #{tpu_custom_call.1} parent=51 // pred_check_branch
          %385 = sbr.rel (%p383) target = $region60
        $region59: #{tpu_custom_call.1} parent=51 // pred_region
          %386 = dma.done %s379, 128
        $region60: #{tpu_custom_call.1} parent=51 // pred_fallthru
          _
        %s387 = sand.u32 %s30, 1
        %s388 = scalar_lea.sflag [#allocation6], %s387
        %s389 = sand.u32 %s90, 1
        %s390 = smul.addr %s389, 8
        %s391 = scalar_lea.vmem [#allocation7], %s390
        // Predicated region
        $region61: #{tpu_custom_call.1} parent=51 // pred_check
          %p392 = pneg %p103
        $region62: #{tpu_custom_call.1} parent=51 // pred_check_branch
          %394 = sbr.rel (%p392) target = $region64
        $region63: #{tpu_custom_call.1} parent=51 // pred_region
          %395 = dma.done %s388, 128
        $region64: #{tpu_custom_call.1} parent=51 // pred_fallthru
          _
        // Predicated region
        $region65: #{tpu_custom_call.1} parent=51 // pred_check
          %p396 = pneg %p124
        $region66: #{tpu_custom_call.1} parent=51 // pred_check_branch
          %398 = sbr.rel (%p396) target = $region68
        $region67: #{tpu_custom_call.1} parent=51 // pred_region
          %399 = dma.done [#allocation9], 512
        $region68: #{tpu_custom_call.1} parent=51 // pred_fallthru
          _
        // Predicated region
        $region69: #{tpu_custom_call.1} parent=51 // pred_check
          %p400 = pneg %p145
        $region70: #{tpu_custom_call.1} parent=51 // pred_check_branch
          %402 = sbr.rel (%p400) target = $region72
        $region71: #{tpu_custom_call.1} parent=51 // pred_region
          %403 = dma.done [#allocation9], 512
        $region72: #{tpu_custom_call.1} parent=51 // pred_fallthru
          _
        // Predicated region
        $region73: #{tpu_custom_call.1} parent=51 // pred_check
          %p404 = pneg %p166
        $region74: #{tpu_custom_call.1} parent=51 // pred_check_branch
          %406 = sbr.rel (%p404) target = $region76
        $region75: #{tpu_custom_call.1} parent=51 // pred_region
          %407 = dma.done [#allocation12], 512
        $region76: #{tpu_custom_call.1} parent=51 // pred_fallthru
          _
        // Predicated region
        $region77: #{tpu_custom_call.1} parent=51 // pred_check
          %p408 = pneg %p187
        $region78: #{tpu_custom_call.1} parent=51 // pred_check_branch
          %410 = sbr.rel (%p408) target = $region80
        $region79: #{tpu_custom_call.1} parent=51 // pred_region
          %411 = dma.done [#allocation12], 512
        $region80: #{tpu_custom_call.1} parent=51 // pred_fallthru
          _
        %s412 = sand.u32 %s38, 1
        %s413 = scalar_lea.sflag [#allocation3], %s412
        %s414 = sand.u32 %s38, 1
        %s415 = smul.addr %s414, 8
        %s416 = scalar_lea.vmem [#allocation2], %s415
        %p417 = pneg %p51
        %p418 = pneg %p48
        %s419 = sand.u32 %s30, 1
        %s420 = scalar_lea.sflag [#allocation6], %s419
        %s421 = sand.u32 %s64, 1
        %s422 = smul.addr %s421, 8
        %s423 = scalar_lea.vmem [#allocation5], %s422
        %p424 = pneg %p77
        %p425 = pneg %p74
        %s426 = sand.u32 %s30, 1
        %s427 = scalar_lea.sflag [#allocation6], %s426
        %s428 = sand.u32 %s90, 1
        %s429 = smul.addr %s428, 8
        %s430 = scalar_lea.vmem [#allocation7], %s429
        %p431 = pneg %p103
        %p432 = pneg %p100
        %p433 = pneg %p124
        %p434 = pneg %p121
        %p435 = pneg %p145
        %p436 = pneg %p142
        %p437 = pneg %p166
        %p438 = pneg %p163
        %p439 = pneg %p187
        %p440 = pneg %p184
        %p441 = pneg %p208
        %p442 = pneg %p205
        %p443 = pneg %p234
        %p444 = pneg %p231
        %s445 = sand.u32 %s221, 1
        %s446 = scalar_lea.sflag [#allocation4], %s445
        %s447 = sand.u32 %s221, 1
        %s448 = smul.addr %s447, 8
        %s449 = scalar_lea.vmem [#allocation14], %s448
        %v450 = vld [vmem:[%s373] sm:$0xff]
        %v451 = vld [vmem:[%s382] sm:$0xff]
        %v452 = vld [vmem:[%s391] sm:$0xff]
        %v453 = vld [vmem:[#allocation8] sm:$0xff]
        %v454 = vld [vmem:[#allocation8 + $0x8] sm:$0xff]
        %v455 = vld [vmem:[#allocation8 + $0x10] sm:$0xff]
        %v456 = vld [vmem:[#allocation8 + $0x18] sm:$0xff]
        %vm457 = vcmask 261120
        %v459 = vsel %vm457, %v450, 0
        %461 = vmatprep.subr.mxu0 0.0
        %462 = vmatpush1.msra.mxu0 %v453
        %463 = vmatprep.subr.mxu0 0.0
        %464 = vmatpush1.msra.mxu0 %v454
        %465 = vmatprep.subr.mxu0 0.0
        %466 = vmatpush1.msra.mxu0 %v455
        %467 = vmatprep.subr.mxu0 0.0
        %468 = vmatpush1.msra.mxu0 %v456
        %469 = vmatprep.subr.mxu0 0.0
        %470 = vmatpush1.msra.mxu0 0.0
        %471 = vmatprep.subr.mxu0 0.0
        %472 = vmatpush1.msra.mxu0 0.0
        %473 = vmatprep.subr.mxu0 0.0
        %474 = vmatpush1.msra.mxu0 0.0
        %475 = vmatprep.subr.mxu0 0.0
        %476 = vmatpush1.msra.mxu0 0.0
        %477 = vmatprep.subr.mxu0 0.0
        %478 = vmatpush1.msra.mxu0 0.0
        %479 = vmatprep.subr.mxu0 0.0
        %480 = vmatpush1.msra.mxu0 0.0
        %481 = vmatprep.subr.mxu0 0.0
        %482 = vmatpush1.msra.mxu0 0.0
        %483 = vmatprep.subr.mxu0 0.0
        %484 = vmatpush1.msra.mxu0 0.0
        %485 = vmatprep.subr.mxu0 0.0
        %486 = vmatpush1.msra.mxu0 0.0
        %487 = vmatprep.subr.mxu0 0.0
        %488 = vmatpush1.msra.mxu0 0.0
        %489 = vmatprep.subr.mxu0 0.0
        %490 = vmatpush1.msra.mxu0 0.0
        %491 = vmatprep.subr.mxu0 0.0
        %492 = vmatpush1.msra.mxu0 0.0
        %493 = vmatprep.subr.mxu0 0.0
        %494 = vmatpush1.msra.mxu0 0.0
        %495 = vmatprep.subr.mxu0 0.0
        %496 = vmatpush1.msra.mxu0 0.0
        %497 = vmatprep.subr.mxu0 0.0
        %498 = vmatpush1.msra.mxu0 0.0
        %499 = vmatprep.subr.mxu0 0.0
        %500 = vmatpush1.msra.mxu0 0.0
        %501 = vmatprep.subr.mxu0 0.0
        %502 = vmatpush1.msra.mxu0 0.0
        %503 = vmatprep.subr.mxu0 0.0
        %504 = vmatpush1.msra.mxu0 0.0
        %505 = vmatprep.subr.mxu0 0.0
        %506 = vmatpush1.msra.mxu0 0.0
        %507 = vmatprep.subr.mxu0 0.0
        %508 = vmatpush1.msra.mxu0 0.0
        %509 = vmatprep.subr.mxu0 0.0
        %510 = vmatpush1.msra.mxu0 0.0
        %511 = vmatprep.subr.mxu0 0.0
        %512 = vmatpush1.msra.mxu0 0.0
        %513 = vmatprep.subr.mxu0 0.0
        %514 = vmatpush1.msra.mxu0 0.0
        %515 = vmatprep.subr.mxu0 0.0
        %516 = vmatpush1.msra.mxu0 0.0
        %517 = vmatprep.subr.mxu0 0.0
        %518 = vmatpush1.msra.mxu0 0.0
        %519 = vmatprep.subr.mxu0 0.0
        %520 = vmatpush1.msra.mxu0 0.0
        %521 = vmatprep.subr.mxu0 0.0
        %522 = vmatpush1.msra.mxu0 0.0
        %523 = vmatprep.subr.mxu0 0.0
        %524 = vmatpush1.msra.mxu0 0.0
        %525 = vmatprep.mubr.f32.mxu0 0.0
        %526 = vmatmul.mubr.f32.gmra.mrb[0].mxu0 %v459
        %v527 = vpop.f32.mrb[0].mxu0
        %v528 = vadd.f32 0.0, %v527
        %v529 = vpop.f32.mrb[0].mxu0
        %530 = vdwg.mxu0
        %v531 = vld [vmem:[#allocation10] sm:$0xff]
        %v532 = vld [vmem:[#allocation10 + $0x8] sm:$0xff]
        %v533 = vld [vmem:[#allocation10 + $0x10] sm:$0xff]
        %v534 = vld [vmem:[#allocation10 + $0x18] sm:$0xff]
        %v536 = vsel %vm457, %v451, 0
        %538 = vmatprep.subr.mxu0 0.0
        %539 = vmatpush1.msra.mxu0 %v531
        %540 = vmatprep.subr.mxu0 0.0
        %541 = vmatpush1.msra.mxu0 %v532
        %542 = vmatprep.subr.mxu0 0.0
        %543 = vmatpush1.msra.mxu0 %v533
        %544 = vmatprep.subr.mxu0 0.0
        %545 = vmatpush1.msra.mxu0 %v534
        %546 = vmatprep.subr.mxu0 0.0
        %547 = vmatpush1.msra.mxu0 0.0
        %548 = vmatprep.subr.mxu0 0.0
        %549 = vmatpush1.msra.mxu0 0.0
        %550 = vmatprep.subr.mxu0 0.0
        %551 = vmatpush1.msra.mxu0 0.0
        %552 = vmatprep.subr.mxu0 0.0
        %553 = vmatpush1.msra.mxu0 0.0
        %554 = vmatprep.subr.mxu0 0.0
        %555 = vmatpush1.msra.mxu0 0.0
        %556 = vmatprep.subr.mxu0 0.0
        %557 = vmatpush1.msra.mxu0 0.0
        %558 = vmatprep.subr.mxu0 0.0
        %559 = vmatpush1.msra.mxu0 0.0
        %560 = vmatprep.subr.mxu0 0.0
        %561 = vmatpush1.msra.mxu0 0.0
        %562 = vmatprep.subr.mxu0 0.0
        %563 = vmatpush1.msra.mxu0 0.0
        %564 = vmatprep.subr.mxu0 0.0
        %565 = vmatpush1.msra.mxu0 0.0
        %566 = vmatprep.subr.mxu0 0.0
        %567 = vmatpush1.msra.mxu0 0.0
        %568 = vmatprep.subr.mxu0 0.0
        %569 = vmatpush1.msra.mxu0 0.0
        %570 = vmatprep.subr.mxu0 0.0
        %571 = vmatpush1.msra.mxu0 0.0
        %572 = vmatprep.subr.mxu0 0.0
        %573 = vmatpush1.msra.mxu0 0.0
        %574 = vmatprep.subr.mxu0 0.0
        %575 = vmatpush1.msra.mxu0 0.0
        %576 = vmatprep.subr.mxu0 0.0
        %577 = vmatpush1.msra.mxu0 0.0
        %578 = vmatprep.subr.mxu0 0.0
        %579 = vmatpush1.msra.mxu0 0.0
        %580 = vmatprep.subr.mxu0 0.0
        %581 = vmatpush1.msra.mxu0 0.0
        %582 = vmatprep.subr.mxu0 0.0
        %583 = vmatpush1.msra.mxu0 0.0
        %584 = vmatprep.subr.mxu0 0.0
        %585 = vmatpush1.msra.mxu0 0.0
        %586 = vmatprep.subr.mxu0 0.0
        %587 = vmatpush1.msra.mxu0 0.0
        %588 = vmatprep.subr.mxu0 0.0
        %589 = vmatpush1.msra.mxu0 0.0
        %590 = vmatprep.subr.mxu0 0.0
        %591 = vmatpush1.msra.mxu0 0.0
        %592 = vmatprep.subr.mxu0 0.0
        %593 = vmatpush1.msra.mxu0 0.0
        %594 = vmatprep.subr.mxu0 0.0
        %595 = vmatpush1.msra.mxu0 0.0
        %596 = vmatprep.subr.mxu0 0.0
        %597 = vmatpush1.msra.mxu0 0.0
        %598 = vmatprep.subr.mxu0 0.0
        %599 = vmatpush1.msra.mxu0 0.0
        %600 = vmatprep.subr.mxu0 0.0
        %601 = vmatpush1.msra.mxu0 0.0
        %602 = vmatprep.mubr.f32.mxu0 0.0
        %603 = vmatmul.mubr.f32.gmra.mrb[0].mxu0 %v536
        %v604 = vpop.f32.mrb[0].mxu0
        %v605 = vadd.f32 0.0, %v604
        %v606 = vpop.f32.mrb[0].mxu0
        %607 = vdwg.mxu0
        %v608 = vld [vmem:[#allocation11] sm:$0xff]
        %v609 = vld [vmem:[#allocation11 + $0x8] sm:$0xff]
        %v610 = vld [vmem:[#allocation11 + $0x10] sm:$0xff]
        %v611 = vld [vmem:[#allocation11 + $0x18] sm:$0xff]
        %v613 = vsel %vm457, %v452, 0
        %615 = vmatprep.subr.mxu0 0.0
        %616 = vmatpush1.msra.mxu0 %v608
        %617 = vmatprep.subr.mxu0 0.0
        %618 = vmatpush1.msra.mxu0 %v609
        %619 = vmatprep.subr.mxu0 0.0
        %620 = vmatpush1.msra.mxu0 %v610
        %621 = vmatprep.subr.mxu0 0.0
        %622 = vmatpush1.msra.mxu0 %v611
        %623 = vmatprep.subr.mxu0 0.0
        %624 = vmatpush1.msra.mxu0 0.0
        %625 = vmatprep.subr.mxu0 0.0
        %626 = vmatpush1.msra.mxu0 0.0
        %627 = vmatprep.subr.mxu0 0.0
        %628 = vmatpush1.msra.mxu0 0.0
        %629 = vmatprep.subr.mxu0 0.0
        %630 = vmatpush1.msra.mxu0 0.0
        %631 = vmatprep.subr.mxu0 0.0
        %632 = vmatpush1.msra.mxu0 0.0
        %633 = vmatprep.subr.mxu0 0.0
        %634 = vmatpush1.msra.mxu0 0.0
        %635 = vmatprep.subr.mxu0 0.0
        %636 = vmatpush1.msra.mxu0 0.0
        %637 = vmatprep.subr.mxu0 0.0
        %638 = vmatpush1.msra.mxu0 0.0
        %639 = vmatprep.subr.mxu0 0.0
        %640 = vmatpush1.msra.mxu0 0.0
        %641 = vmatprep.subr.mxu0 0.0
        %642 = vmatpush1.msra.mxu0 0.0
        %643 = vmatprep.subr.mxu0 0.0
        %644 = vmatpush1.msra.mxu0 0.0
        %645 = vmatprep.subr.mxu0 0.0
        %646 = vmatpush1.msra.mxu0 0.0
        %647 = vmatprep.subr.mxu0 0.0
        %648 = vmatpush1.msra.mxu0 0.0
        %649 = vmatprep.subr.mxu0 0.0
        %650 = vmatpush1.msra.mxu0 0.0
        %651 = vmatprep.subr.mxu0 0.0
        %652 = vmatpush1.msra.mxu0 0.0
        %653 = vmatprep.subr.mxu0 0.0
        %654 = vmatpush1.msra.mxu0 0.0
        %655 = vmatprep.subr.mxu0 0.0
        %656 = vmatpush1.msra.mxu0 0.0
        %657 = vmatprep.subr.mxu0 0.0
        %658 = vmatpush1.msra.mxu0 0.0
        %659 = vmatprep.subr.mxu0 0.0
        %660 = vmatpush1.msra.mxu0 0.0
        %661 = vmatprep.subr.mxu0 0.0
        %662 = vmatpush1.msra.mxu0 0.0
        %663 = vmatprep.subr.mxu0 0.0
        %664 = vmatpush1.msra.mxu0 0.0
        %665 = vmatprep.subr.mxu0 0.0
        %666 = vmatpush1.msra.mxu0 0.0
        %667 = vmatprep.subr.mxu0 0.0
        %668 = vmatpush1.msra.mxu0 0.0
        %669 = vmatprep.subr.mxu0 0.0
        %670 = vmatpush1.msra.mxu0 0.0
        %671 = vmatprep.subr.mxu0 0.0
        %672 = vmatpush1.msra.mxu0 0.0
        %673 = vmatprep.subr.mxu0 0.0
        %674 = vmatpush1.msra.mxu0 0.0
        %675 = vmatprep.subr.mxu0 0.0
        %676 = vmatpush1.msra.mxu0 0.0
        %677 = vmatprep.subr.mxu0 0.0
        %678 = vmatpush1.msra.mxu0 0.0
        %679 = vmatprep.mubr.f32.mxu0 0.0
        %680 = vmatmul.mubr.f32.gmra.mrb[0].mxu0 %v613
        %v681 = vpop.f32.mrb[0].mxu0
        %v682 = vadd.f32 0.0, %v681
        %v683 = vpop.f32.mrb[0].mxu0
        %684 = vdwg.mxu0
        %vm685 = vcmask 31744
        %v687 = vsel %vm685, %v528, 0
        %v690 = vsel %vm685, %v605, 0
        %692 = vmatprep.subr.mxu0 0.0
        %693 = vmatpush1.xpose.msra.mxu0 %v690
        %694 = vmatprep.subr.mxu0 0.0
        %695 = vmatpush1.xpose.msra.mxu0 0.0
        %696 = vmatprep.subr.mxu0 0.0
        %697 = vmatpush1.xpose.msra.mxu0 0.0
        %698 = vmatprep.subr.mxu0 0.0
        %699 = vmatpush1.xpose.msra.mxu0 0.0
        %700 = vmatprep.subr.mxu0 0.0
        %701 = vmatpush1.xpose.msra.mxu0 0.0
        %702 = vmatprep.subr.mxu0 0.0
        %703 = vmatpush1.xpose.msra.mxu0 0.0
        %704 = vmatprep.subr.mxu0 0.0
        %705 = vmatpush1.xpose.msra.mxu0 0.0
        %706 = vmatprep.subr.mxu0 0.0
        %707 = vmatpush1.xpose.msra.mxu0 0.0
        %708 = vmatprep.subr.mxu0 0.0
        %709 = vmatpush1.xpose.msra.mxu0 0.0
        %710 = vmatprep.subr.mxu0 0.0
        %711 = vmatpush1.xpose.msra.mxu0 0.0
        %712 = vmatprep.subr.mxu0 0.0
        %713 = vmatpush1.xpose.msra.mxu0 0.0
        %714 = vmatprep.subr.mxu0 0.0
        %715 = vmatpush1.xpose.msra.mxu0 0.0
        %716 = vmatprep.subr.mxu0 0.0
        %717 = vmatpush1.xpose.msra.mxu0 0.0
        %718 = vmatprep.subr.mxu0 0.0
        %719 = vmatpush1.xpose.msra.mxu0 0.0
        %720 = vmatprep.subr.mxu0 0.0
        %721 = vmatpush1.xpose.msra.mxu0 0.0
        %722 = vmatprep.subr.mxu0 0.0
        %723 = vmatpush1.xpose.msra.mxu0 0.0
        %724 = vmatprep.subr.mxu0 0.0
        %725 = vmatpush1.xpose.msra.mxu0 0.0
        %726 = vmatprep.subr.mxu0 0.0
        %727 = vmatpush1.xpose.msra.mxu0 0.0
        %728 = vmatprep.subr.mxu0 0.0
        %729 = vmatpush1.xpose.msra.mxu0 0.0
        %730 = vmatprep.subr.mxu0 0.0
        %731 = vmatpush1.xpose.msra.mxu0 0.0
        %732 = vmatprep.subr.mxu0 0.0
        %733 = vmatpush1.xpose.msra.mxu0 0.0
        %734 = vmatprep.subr.mxu0 0.0
        %735 = vmatpush1.xpose.msra.mxu0 0.0
        %736 = vmatprep.subr.mxu0 0.0
        %737 = vmatpush1.xpose.msra.mxu0 0.0
        %738 = vmatprep.subr.mxu0 0.0
        %739 = vmatpush1.xpose.msra.mxu0 0.0
        %740 = vmatprep.subr.mxu0 0.0
        %741 = vmatpush1.xpose.msra.mxu0 0.0
        %742 = vmatprep.subr.mxu0 0.0
        %743 = vmatpush1.xpose.msra.mxu0 0.0
        %744 = vmatprep.subr.mxu0 0.0
        %745 = vmatpush1.xpose.msra.mxu0 0.0
        %746 = vmatprep.subr.mxu0 0.0
        %747 = vmatpush1.xpose.msra.mxu0 0.0
        %748 = vmatprep.subr.mxu0 0.0
        %749 = vmatpush1.xpose.msra.mxu0 0.0
        %750 = vmatprep.subr.mxu0 0.0
        %751 = vmatpush1.xpose.msra.mxu0 0.0
        %752 = vmatprep.subr.mxu0 0.0
        %753 = vmatpush1.xpose.msra.mxu0 0.0
        %754 = vmatprep.subr.mxu0 0.0
        %755 = vmatpush1.xpose.msra.mxu0 0.0
        %756 = vmatprep.mubr.f32.mxu0 0.0
        %757 = vmatmul.mubr.f32.gmra.mrb[0].mxu0 %v687
        %v758 = vpop.f32.mrb[0].mxu0
        %v759 = vadd.f32 0.0, %v758
        %v760 = vpop.f32.mrb[0].mxu0
        %761 = vdwg.mxu0
        %vm762 = vcmask 64512
        %v763 = vsel %vm762, %v759, -inf
        %764 = vmax.xlane.f32.xlu0 %v763
        %v765 = vpop.xlane.xlu0 %764
        %v766 = vsub.f32 %v759, %v765
        %v767 = vmul.f32 %v766, 1.442695
        %v768 = vpow.pop %v767
        %v769 = vsel %vm762, %v768, 0.0
        %770 = vadd.xlane.f32.xlu0 %v769
        %v771 = vpop.xlane.xlu0 %770
        %v772 = vrcp.pop %v771
        %v773 = vmul.f32 %v768, %v772
        %v775 = vsel %vm762, %v773, 0
        %777 = vmatprep.subr.mxu0 0.0
        %778 = vmatpush1.msra.mxu0 %v682
        %779 = vmatprep.subr.mxu0 0.0
        %780 = vmatpush1.msra.mxu0 0.0
        %781 = vmatprep.subr.mxu0 0.0
        %782 = vmatpush1.msra.mxu0 0.0
        %783 = vmatprep.subr.mxu0 0.0
        %784 = vmatpush1.msra.mxu0 0.0
        %785 = vmatprep.subr.mxu0 0.0
        %786 = vmatpush1.msra.mxu0 0.0
        %787 = vmatprep.subr.mxu0 0.0
        %788 = vmatpush1.msra.mxu0 0.0
        %789 = vmatprep.subr.mxu0 0.0
        %790 = vmatpush1.msra.mxu0 0.0
        %791 = vmatprep.subr.mxu0 0.0
        %792 = vmatpush1.msra.mxu0 0.0
        %793 = vmatprep.subr.mxu0 0.0
        %794 = vmatpush1.msra.mxu0 0.0
        %795 = vmatprep.subr.mxu0 0.0
        %796 = vmatpush1.msra.mxu0 0.0
        %797 = vmatprep.subr.mxu0 0.0
        %798 = vmatpush1.msra.mxu0 0.0
        %799 = vmatprep.subr.mxu0 0.0
        %800 = vmatpush1.msra.mxu0 0.0
        %801 = vmatprep.subr.mxu0 0.0
        %802 = vmatpush1.msra.mxu0 0.0
        %803 = vmatprep.subr.mxu0 0.0
        %804 = vmatpush1.msra.mxu0 0.0
        %805 = vmatprep.subr.mxu0 0.0
        %806 = vmatpush1.msra.mxu0 0.0
        %807 = vmatprep.subr.mxu0 0.0
        %808 = vmatpush1.msra.mxu0 0.0
        %809 = vmatprep.subr.mxu0 0.0
        %810 = vmatpush1.msra.mxu0 0.0
        %811 = vmatprep.subr.mxu0 0.0
        %812 = vmatpush1.msra.mxu0 0.0
        %813 = vmatprep.subr.mxu0 0.0
        %814 = vmatpush1.msra.mxu0 0.0
        %815 = vmatprep.subr.mxu0 0.0
        %816 = vmatpush1.msra.mxu0 0.0
        %817 = vmatprep.subr.mxu0 0.0
        %818 = vmatpush1.msra.mxu0 0.0
        %819 = vmatprep.subr.mxu0 0.0
        %820 = vmatpush1.msra.mxu0 0.0
        %821 = vmatprep.subr.mxu0 0.0
        %822 = vmatpush1.msra.mxu0 0.0
        %823 = vmatprep.subr.mxu0 0.0
        %824 = vmatpush1.msra.mxu0 0.0
        %825 = vmatprep.subr.mxu0 0.0
        %826 = vmatpush1.msra.mxu0 0.0
        %827 = vmatprep.subr.mxu0 0.0
        %828 = vmatpush1.msra.mxu0 0.0
        %829 = vmatprep.subr.mxu0 0.0
        %830 = vmatpush1.msra.mxu0 0.0
        %831 = vmatprep.subr.mxu0 0.0
        %832 = vmatpush1.msra.mxu0 0.0
        %833 = vmatprep.subr.mxu0 0.0
        %834 = vmatpush1.msra.mxu0 0.0
        %835 = vmatprep.subr.mxu0 0.0
        %836 = vmatpush1.msra.mxu0 0.0
        %837 = vmatprep.subr.mxu0 0.0
        %838 = vmatpush1.msra.mxu0 0.0
        %839 = vmatprep.subr.mxu0 0.0
        %840 = vmatpush1.msra.mxu0 0.0
        %841 = vmatprep.mubr.f32.mxu0 0.0
        %842 = vmatmul.mubr.f32.gmra.mrb[0].mxu0 %v775
        %v843 = vpop.f32.mrb[0].mxu0
        %v844 = vadd.f32 0.0, %v843
        %v845 = vpop.f32.mrb[0].mxu0
        %846 = vdwg.mxu0
        %847 = vrot.lane.b32.xlu0 %v528, 124
        %v848 = vpop.permute.xlu0 %847
        %849 = vrot.lane.b32.xlu0 %v605, 124
        %v850 = vpop.permute.xlu0 %849
        %v851 = vsel %vm685, %v848, 0
        %v853 = vsel %vm685, %v850, 0
        %855 = vmatprep.subr.mxu0 0.0
        %856 = vmatpush1.xpose.msra.mxu0 %v853
        %857 = vmatprep.subr.mxu0 0.0
        %858 = vmatpush1.xpose.msra.mxu0 0.0
        %859 = vmatprep.subr.mxu0 0.0
        %860 = vmatpush1.xpose.msra.mxu0 0.0
        %861 = vmatprep.subr.mxu0 0.0
        %862 = vmatpush1.xpose.msra.mxu0 0.0
        %863 = vmatprep.subr.mxu0 0.0
        %864 = vmatpush1.xpose.msra.mxu0 0.0
        %865 = vmatprep.subr.mxu0 0.0
        %866 = vmatpush1.xpose.msra.mxu0 0.0
        %867 = vmatprep.subr.mxu0 0.0
        %868 = vmatpush1.xpose.msra.mxu0 0.0
        %869 = vmatprep.subr.mxu0 0.0
        %870 = vmatpush1.xpose.msra.mxu0 0.0
        %871 = vmatprep.subr.mxu0 0.0
        %872 = vmatpush1.xpose.msra.mxu0 0.0
        %873 = vmatprep.subr.mxu0 0.0
        %874 = vmatpush1.xpose.msra.mxu0 0.0
        %875 = vmatprep.subr.mxu0 0.0
        %876 = vmatpush1.xpose.msra.mxu0 0.0
        %877 = vmatprep.subr.mxu0 0.0
        %878 = vmatpush1.xpose.msra.mxu0 0.0
        %879 = vmatprep.subr.mxu0 0.0
        %880 = vmatpush1.xpose.msra.mxu0 0.0
        %881 = vmatprep.subr.mxu0 0.0
        %882 = vmatpush1.xpose.msra.mxu0 0.0
        %883 = vmatprep.subr.mxu0 0.0
        %884 = vmatpush1.xpose.msra.mxu0 0.0
        %885 = vmatprep.subr.mxu0 0.0
        %886 = vmatpush1.xpose.msra.mxu0 0.0
        %887 = vmatprep.subr.mxu0 0.0
        %888 = vmatpush1.xpose.msra.mxu0 0.0
        %889 = vmatprep.subr.mxu0 0.0
        %890 = vmatpush1.xpose.msra.mxu0 0.0
        %891 = vmatprep.subr.mxu0 0.0
        %892 = vmatpush1.xpose.msra.mxu0 0.0
        %893 = vmatprep.subr.mxu0 0.0
        %894 = vmatpush1.xpose.msra.mxu0 0.0
        %895 = vmatprep.subr.mxu0 0.0
        %896 = vmatpush1.xpose.msra.mxu0 0.0
        %897 = vmatprep.subr.mxu0 0.0
        %898 = vmatpush1.xpose.msra.mxu0 0.0
        %899 = vmatprep.subr.mxu0 0.0
        %900 = vmatpush1.xpose.msra.mxu0 0.0
        %901 = vmatprep.subr.mxu0 0.0
        %902 = vmatpush1.xpose.msra.mxu0 0.0
        %903 = vmatprep.subr.mxu0 0.0
        %904 = vmatpush1.xpose.msra.mxu0 0.0
        %905 = vmatprep.subr.mxu0 0.0
        %906 = vmatpush1.xpose.msra.mxu0 0.0
        %907 = vmatprep.subr.mxu0 0.0
        %908 = vmatpush1.xpose.msra.mxu0 0.0
        %909 = vmatprep.subr.mxu0 0.0
        %910 = vmatpush1.xpose.msra.mxu0 0.0
        %911 = vmatprep.subr.mxu0 0.0
        %912 = vmatpush1.xpose.msra.mxu0 0.0
        %913 = vmatprep.subr.mxu0 0.0
        %914 = vmatpush1.xpose.msra.mxu0 0.0
        %915 = vmatprep.subr.mxu0 0.0
        %916 = vmatpush1.xpose.msra.mxu0 0.0
        %917 = vmatprep.subr.mxu0 0.0
        %918 = vmatpush1.xpose.msra.mxu0 0.0
        %919 = vmatprep.mubr.f32.mxu0 0.0
        %920 = vmatmul.mubr.f32.gmra.mrb[0].mxu0 %v851
        %v921 = vpop.f32.mrb[0].mxu0
        %v922 = vadd.f32 0.0, %v921
        %v923 = vpop.f32.mrb[0].mxu0
        %924 = vdwg.mxu0
        %v925 = vsel %vm762, %v922, -inf
        %926 = vmax.xlane.f32.xlu0 %v925
        %v927 = vpop.xlane.xlu0 %926
        %v928 = vsub.f32 %v922, %v927
        %v929 = vmul.f32 %v928, 1.442695
        %v930 = vpow.pop %v929
        %v931 = vsel %vm762, %v930, 0.0
        %932 = vadd.xlane.f32.xlu0 %v931
        %v933 = vpop.xlane.xlu0 %932
        %v934 = vrcp.pop %v933
        %v935 = vmul.f32 %v930, %v934
        %937 = vrot.lane.b32.xlu0 %v682, 124
        %v938 = vpop.permute.xlu0 %937
        %v941 = vsel %vm762, %v935, 0
        %943 = vmatprep.subr.mxu0 0.0
        %944 = vmatpush1.msra.mxu0 %v938
        %945 = vmatprep.subr.mxu0 0.0
        %946 = vmatpush1.msra.mxu0 0.0
        %947 = vmatprep.subr.mxu0 0.0
        %948 = vmatpush1.msra.mxu0 0.0
        %949 = vmatprep.subr.mxu0 0.0
        %950 = vmatpush1.msra.mxu0 0.0
        %951 = vmatprep.subr.mxu0 0.0
        %952 = vmatpush1.msra.mxu0 0.0
        %953 = vmatprep.subr.mxu0 0.0
        %954 = vmatpush1.msra.mxu0 0.0
        %955 = vmatprep.subr.mxu0 0.0
        %956 = vmatpush1.msra.mxu0 0.0
        %957 = vmatprep.subr.mxu0 0.0
        %958 = vmatpush1.msra.mxu0 0.0
        %959 = vmatprep.subr.mxu0 0.0
        %960 = vmatpush1.msra.mxu0 0.0
        %961 = vmatprep.subr.mxu0 0.0
        %962 = vmatpush1.msra.mxu0 0.0
        %963 = vmatprep.subr.mxu0 0.0
        %964 = vmatpush1.msra.mxu0 0.0
        %965 = vmatprep.subr.mxu0 0.0
        %966 = vmatpush1.msra.mxu0 0.0
        %967 = vmatprep.subr.mxu0 0.0
        %968 = vmatpush1.msra.mxu0 0.0
        %969 = vmatprep.subr.mxu0 0.0
        %970 = vmatpush1.msra.mxu0 0.0
        %971 = vmatprep.subr.mxu0 0.0
        %972 = vmatpush1.msra.mxu0 0.0
        %973 = vmatprep.subr.mxu0 0.0
        %974 = vmatpush1.msra.mxu0 0.0
        %975 = vmatprep.subr.mxu0 0.0
        %976 = vmatpush1.msra.mxu0 0.0
        %977 = vmatprep.subr.mxu0 0.0
        %978 = vmatpush1.msra.mxu0 0.0
        %979 = vmatprep.subr.mxu0 0.0
        %980 = vmatpush1.msra.mxu0 0.0
        %981 = vmatprep.subr.mxu0 0.0
        %982 = vmatpush1.msra.mxu0 0.0
        %983 = vmatprep.subr.mxu0 0.0
        %984 = vmatpush1.msra.mxu0 0.0
        %985 = vmatprep.subr.mxu0 0.0
        %986 = vmatpush1.msra.mxu0 0.0
        %987 = vmatprep.subr.mxu0 0.0
        %988 = vmatpush1.msra.mxu0 0.0
        %989 = vmatprep.subr.mxu0 0.0
        %990 = vmatpush1.msra.mxu0 0.0
        %991 = vmatprep.subr.mxu0 0.0
        %992 = vmatpush1.msra.mxu0 0.0
        %993 = vmatprep.subr.mxu0 0.0
        %994 = vmatpush1.msra.mxu0 0.0
        %995 = vmatprep.subr.mxu0 0.0
        %996 = vmatpush1.msra.mxu0 0.0
        %997 = vmatprep.subr.mxu0 0.0
        %998 = vmatpush1.msra.mxu0 0.0
        %999 = vmatprep.subr.mxu0 0.0
        %1000 = vmatpush1.msra.mxu0 0.0
        %1001 = vmatprep.subr.mxu0 0.0
        %1002 = vmatpush1.msra.mxu0 0.0
        %1003 = vmatprep.subr.mxu0 0.0
        %1004 = vmatpush1.msra.mxu0 0.0
        %1005 = vmatprep.subr.mxu0 0.0
        %1006 = vmatpush1.msra.mxu0 0.0
        %1007 = vmatprep.mubr.f32.mxu0 0.0
        %1008 = vmatmul.mubr.f32.gmra.mrb[0].mxu0 %v941
        %v1009 = vpop.f32.mrb[0].mxu0
        %v1010 = vadd.f32 0.0, %v1009
        %v1011 = vpop.f32.mrb[0].mxu0
        %1012 = vdwg.mxu0
        %1013 = vrot.lane.b32.xlu0 %v528, 120
        %v1014 = vpop.permute.xlu0 %1013
        %1015 = vrot.lane.b32.xlu0 %v605, 120
        %v1016 = vpop.permute.xlu0 %1015
        %v1017 = vsel %vm685, %v1014, 0
        %v1019 = vsel %vm685, %v1016, 0
        %1021 = vmatprep.subr.mxu0 0.0
        %1022 = vmatpush1.xpose.msra.mxu0 %v1019
        %1023 = vmatprep.subr.mxu0 0.0
        %1024 = vmatpush1.xpose.msra.mxu0 0.0
        %1025 = vmatprep.subr.mxu0 0.0
        %1026 = vmatpush1.xpose.msra.mxu0 0.0
        %1027 = vmatprep.subr.mxu0 0.0
        %1028 = vmatpush1.xpose.msra.mxu0 0.0
        %1029 = vmatprep.subr.mxu0 0.0
        %1030 = vmatpush1.xpose.msra.mxu0 0.0
        %1031 = vmatprep.subr.mxu0 0.0
        %1032 = vmatpush1.xpose.msra.mxu0 0.0
        %1033 = vmatprep.subr.mxu0 0.0
        %1034 = vmatpush1.xpose.msra.mxu0 0.0
        %1035 = vmatprep.subr.mxu0 0.0
        %1036 = vmatpush1.xpose.msra.mxu0 0.0
        %1037 = vmatprep.subr.mxu0 0.0
        %1038 = vmatpush1.xpose.msra.mxu0 0.0
        %1039 = vmatprep.subr.mxu0 0.0
        %1040 = vmatpush1.xpose.msra.mxu0 0.0
        %1041 = vmatprep.subr.mxu0 0.0
        %1042 = vmatpush1.xpose.msra.mxu0 0.0
        %1043 = vmatprep.subr.mxu0 0.0
        %1044 = vmatpush1.xpose.msra.mxu0 0.0
        %1045 = vmatprep.subr.mxu0 0.0
        %1046 = vmatpush1.xpose.msra.mxu0 0.0
        %1047 = vmatprep.subr.mxu0 0.0
        %1048 = vmatpush1.xpose.msra.mxu0 0.0
        %1049 = vmatprep.subr.mxu0 0.0
        %1050 = vmatpush1.xpose.msra.mxu0 0.0
        %1051 = vmatprep.subr.mxu0 0.0
        %1052 = vmatpush1.xpose.msra.mxu0 0.0
        %1053 = vmatprep.subr.mxu0 0.0
        %1054 = vmatpush1.xpose.msra.mxu0 0.0
        %1055 = vmatprep.subr.mxu0 0.0
        %1056 = vmatpush1.xpose.msra.mxu0 0.0
        %1057 = vmatprep.subr.mxu0 0.0
        %1058 = vmatpush1.xpose.msra.mxu0 0.0
        %1059 = vmatprep.subr.mxu0 0.0
        %1060 = vmatpush1.xpose.msra.mxu0 0.0
        %1061 = vmatprep.subr.mxu0 0.0
        %1062 = vmatpush1.xpose.msra.mxu0 0.0
        %1063 = vmatprep.subr.mxu0 0.0
        %1064 = vmatpush1.xpose.msra.mxu0 0.0
        %1065 = vmatprep.subr.mxu0 0.0
        %1066 = vmatpush1.xpose.msra.mxu0 0.0
        %1067 = vmatprep.subr.mxu0 0.0
        %1068 = vmatpush1.xpose.msra.mxu0 0.0
        %1069 = vmatprep.subr.mxu0 0.0
        %1070 = vmatpush1.xpose.msra.mxu0 0.0
        %1071 = vmatprep.subr.mxu0 0.0
        %1072 = vmatpush1.xpose.msra.mxu0 0.0
        %1073 = vmatprep.subr.mxu0 0.0
        %1074 = vmatpush1.xpose.msra.mxu0 0.0
        %1075 = vmatprep.subr.mxu0 0.0
        %1076 = vmatpush1.xpose.msra.mxu0 0.0
        %1077 = vmatprep.subr.mxu0 0.0
        %1078 = vmatpush1.xpose.msra.mxu0 0.0
        %1079 = vmatprep.subr.mxu0 0.0
        %1080 = vmatpush1.xpose.msra.mxu0 0.0
        %1081 = vmatprep.subr.mxu0 0.0
        %1082 = vmatpush1.xpose.msra.mxu0 0.0
        %1083 = vmatprep.subr.mxu0 0.0
        %1084 = vmatpush1.xpose.msra.mxu0 0.0
        %1085 = vmatprep.mubr.f32.mxu0 0.0
        %1086 = vmatmul.mubr.f32.gmra.mrb[0].mxu0 %v1017
        %v1087 = vpop.f32.mrb[0].mxu0
        %v1088 = vadd.f32 0.0, %v1087
        %v1089 = vpop.f32.mrb[0].mxu0
        %1090 = vdwg.mxu0
        %v1091 = vsel %vm762, %v1088, -inf
        %1092 = vmax.xlane.f32.xlu0 %v1091
        %v1093 = vpop.xlane.xlu0 %1092
        %v1094 = vsub.f32 %v1088, %v1093
        %v1095 = vmul.f32 %v1094, 1.442695
        %v1096 = vpow.pop %v1095
        %v1097 = vsel %vm762, %v1096, 0.0
        %1098 = vadd.xlane.f32.xlu0 %v1097
        %v1099 = vpop.xlane.xlu0 %1098
        %v1100 = vrcp.pop %v1099
        %v1101 = vmul.f32 %v1096, %v1100
        %1102 = vrot.lane.b32.xlu0 %v682, 120
        %v1103 = vpop.permute.xlu0 %1102
        %v1106 = vsel %vm762, %v1101, 0
        %1108 = vmatprep.subr.mxu0 0.0
        %1109 = vmatpush1.msra.mxu0 %v1103
        %1110 = vmatprep.subr.mxu0 0.0
        %1111 = vmatpush1.msra.mxu0 0.0
        %1112 = vmatprep.subr.mxu0 0.0
        %1113 = vmatpush1.msra.mxu0 0.0
        %1114 = vmatprep.subr.mxu0 0.0
        %1115 = vmatpush1.msra.mxu0 0.0
        %1116 = vmatprep.subr.mxu0 0.0
        %1117 = vmatpush1.msra.mxu0 0.0
        %1118 = vmatprep.subr.mxu0 0.0
        %1119 = vmatpush1.msra.mxu0 0.0
        %1120 = vmatprep.subr.mxu0 0.0
        %1121 = vmatpush1.msra.mxu0 0.0
        %1122 = vmatprep.subr.mxu0 0.0
        %1123 = vmatpush1.msra.mxu0 0.0
        %1124 = vmatprep.subr.mxu0 0.0
        %1125 = vmatpush1.msra.mxu0 0.0
        %1126 = vmatprep.subr.mxu0 0.0
        %1127 = vmatpush1.msra.mxu0 0.0
        %1128 = vmatprep.subr.mxu0 0.0
        %1129 = vmatpush1.msra.mxu0 0.0
        %1130 = vmatprep.subr.mxu0 0.0
        %1131 = vmatpush1.msra.mxu0 0.0
        %1132 = vmatprep.subr.mxu0 0.0
        %1133 = vmatpush1.msra.mxu0 0.0
        %1134 = vmatprep.subr.mxu0 0.0
        %1135 = vmatpush1.msra.mxu0 0.0
        %1136 = vmatprep.subr.mxu0 0.0
        %1137 = vmatpush1.msra.mxu0 0.0
        %1138 = vmatprep.subr.mxu0 0.0
        %1139 = vmatpush1.msra.mxu0 0.0
        %1140 = vmatprep.subr.mxu0 0.0
        %1141 = vmatpush1.msra.mxu0 0.0
        %1142 = vmatprep.subr.mxu0 0.0
        %1143 = vmatpush1.msra.mxu0 0.0
        %1144 = vmatprep.subr.mxu0 0.0
        %1145 = vmatpush1.msra.mxu0 0.0
        %1146 = vmatprep.subr.mxu0 0.0
        %1147 = vmatpush1.msra.mxu0 0.0
        %1148 = vmatprep.subr.mxu0 0.0
        %1149 = vmatpush1.msra.mxu0 0.0
        %1150 = vmatprep.subr.mxu0 0.0
        %1151 = vmatpush1.msra.mxu0 0.0
        %1152 = vmatprep.subr.mxu0 0.0
        %1153 = vmatpush1.msra.mxu0 0.0
        %1154 = vmatprep.subr.mxu0 0.0
        %1155 = vmatpush1.msra.mxu0 0.0
        %1156 = vmatprep.subr.mxu0 0.0
        %1157 = vmatpush1.msra.mxu0 0.0
        %1158 = vmatprep.subr.mxu0 0.0
        %1159 = vmatpush1.msra.mxu0 0.0
        %1160 = vmatprep.subr.mxu0 0.0
        %1161 = vmatpush1.msra.mxu0 0.0
        %1162 = vmatprep.subr.mxu0 0.0
        %1163 = vmatpush1.msra.mxu0 0.0
        %1164 = vmatprep.subr.mxu0 0.0
        %1165 = vmatpush1.msra.mxu0 0.0
        %1166 = vmatprep.subr.mxu0 0.0
        %1167 = vmatpush1.msra.mxu0 0.0
        %1168 = vmatprep.subr.mxu0 0.0
        %1169 = vmatpush1.msra.mxu0 0.0
        %1170 = vmatprep.subr.mxu0 0.0
        %1171 = vmatpush1.msra.mxu0 0.0
        %1172 = vmatprep.mubr.f32.mxu0 0.0
        %1173 = vmatmul.mubr.f32.gmra.mrb[0].mxu0 %v1106
        %v1174 = vpop.f32.mrb[0].mxu0
        %v1175 = vadd.f32 0.0, %v1174
        %v1176 = vpop.f32.mrb[0].mxu0
        %1177 = vdwg.mxu0
        %1178 = vrot.lane.b32.xlu0 %v528, 116
        %v1179 = vpop.permute.xlu0 %1178
        %1180 = vrot.lane.b32.xlu0 %v605, 116
        %v1181 = vpop.permute.xlu0 %1180
        %v1182 = vsel %vm685, %v1179, 0
        %v1184 = vsel %vm685, %v1181, 0
        %1186 = vmatprep.subr.mxu0 0.0
        %1187 = vmatpush1.xpose.msra.mxu0 %v1184
        %1188 = vmatprep.subr.mxu0 0.0
        %1189 = vmatpush1.xpose.msra.mxu0 0.0
        %1190 = vmatprep.subr.mxu0 0.0
        %1191 = vmatpush1.xpose.msra.mxu0 0.0
        %1192 = vmatprep.subr.mxu0 0.0
        %1193 = vmatpush1.xpose.msra.mxu0 0.0
        %1194 = vmatprep.subr.mxu0 0.0
        %1195 = vmatpush1.xpose.msra.mxu0 0.0
        %1196 = vmatprep.subr.mxu0 0.0
        %1197 = vmatpush1.xpose.msra.mxu0 0.0
        %1198 = vmatprep.subr.mxu0 0.0
        %1199 = vmatpush1.xpose.msra.mxu0 0.0
        %1200 = vmatprep.subr.mxu0 0.0
        %1201 = vmatpush1.xpose.msra.mxu0 0.0
        %1202 = vmatprep.subr.mxu0 0.0
        %1203 = vmatpush1.xpose.msra.mxu0 0.0
        %1204 = vmatprep.subr.mxu0 0.0
        %1205 = vmatpush1.xpose.msra.mxu0 0.0
        %1206 = vmatprep.subr.mxu0 0.0
        %1207 = vmatpush1.xpose.msra.mxu0 0.0
        %1208 = vmatprep.subr.mxu0 0.0
        %1209 = vmatpush1.xpose.msra.mxu0 0.0
        %1210 = vmatprep.subr.mxu0 0.0
        %1211 = vmatpush1.xpose.msra.mxu0 0.0
        %1212 = vmatprep.subr.mxu0 0.0
        %1213 = vmatpush1.xpose.msra.mxu0 0.0
        %1214 = vmatprep.subr.mxu0 0.0
        %1215 = vmatpush1.xpose.msra.mxu0 0.0
        %1216 = vmatprep.subr.mxu0 0.0
        %1217 = vmatpush1.xpose.msra.mxu0 0.0
        %1218 = vmatprep.subr.mxu0 0.0
        %1219 = vmatpush1.xpose.msra.mxu0 0.0
        %1220 = vmatprep.subr.mxu0 0.0
        %1221 = vmatpush1.xpose.msra.mxu0 0.0
        %1222 = vmatprep.subr.mxu0 0.0
        %1223 = vmatpush1.xpose.msra.mxu0 0.0
        %1224 = vmatprep.subr.mxu0 0.0
        %1225 = vmatpush1.xpose.msra.mxu0 0.0
        %1226 = vmatprep.subr.mxu0 0.0
        %1227 = vmatpush1.xpose.msra.mxu0 0.0
        %1228 = vmatprep.subr.mxu0 0.0
        %1229 = vmatpush1.xpose.msra.mxu0 0.0
        %1230 = vmatprep.subr.mxu0 0.0
        %1231 = vmatpush1.xpose.msra.mxu0 0.0
        %1232 = vmatprep.subr.mxu0 0.0
        %1233 = vmatpush1.xpose.msra.mxu0 0.0
        %1234 = vmatprep.subr.mxu0 0.0
        %1235 = vmatpush1.xpose.msra.mxu0 0.0
        %1236 = vmatprep.subr.mxu0 0.0
        %1237 = vmatpush1.xpose.msra.mxu0 0.0
        %1238 = vmatprep.subr.mxu0 0.0
        %1239 = vmatpush1.xpose.msra.mxu0 0.0
        %1240 = vmatprep.subr.mxu0 0.0
        %1241 = vmatpush1.xpose.msra.mxu0 0.0
        %1242 = vmatprep.subr.mxu0 0.0
        %1243 = vmatpush1.xpose.msra.mxu0 0.0
        %1244 = vmatprep.subr.mxu0 0.0
        %1245 = vmatpush1.xpose.msra.mxu0 0.0
        %1246 = vmatprep.subr.mxu0 0.0
        %1247 = vmatpush1.xpose.msra.mxu0 0.0
        %1248 = vmatprep.subr.mxu0 0.0
        %1249 = vmatpush1.xpose.msra.mxu0 0.0
        %1250 = vmatprep.mubr.f32.mxu0 0.0
        %1251 = vmatmul.mubr.f32.gmra.mrb[0].mxu0 %v1182
        %v1252 = vpop.f32.mrb[0].mxu0
        %v1253 = vadd.f32 0.0, %v1252
        %v1254 = vpop.f32.mrb[0].mxu0
        %1255 = vdwg.mxu0
        %v1256 = vsel %vm762, %v1253, -inf
        %1257 = vmax.xlane.f32.xlu0 %v1256
        %v1258 = vpop.xlane.xlu0 %1257
        %v1259 = vsub.f32 %v1253, %v1258
        %v1260 = vmul.f32 %v1259, 1.442695
        %v1261 = vpow.pop %v1260
        %v1262 = vsel %vm762, %v1261, 0.0
        %1263 = vadd.xlane.f32.xlu0 %v1262
        %v1264 = vpop.xlane.xlu0 %1263
        %v1265 = vrcp.pop %v1264
        %v1266 = vmul.f32 %v1261, %v1265
        %1267 = vrot.lane.b32.xlu0 %v682, 116
        %v1268 = vpop.permute.xlu0 %1267
        %v1271 = vsel %vm762, %v1266, 0
        %1273 = vmatprep.subr.mxu0 0.0
        %1274 = vmatpush1.msra.mxu0 %v1268
        %1275 = vmatprep.subr.mxu0 0.0
        %1276 = vmatpush1.msra.mxu0 0.0
        %1277 = vmatprep.subr.mxu0 0.0
        %1278 = vmatpush1.msra.mxu0 0.0
        %1279 = vmatprep.subr.mxu0 0.0
        %1280 = vmatpush1.msra.mxu0 0.0
        %1281 = vmatprep.subr.mxu0 0.0
        %1282 = vmatpush1.msra.mxu0 0.0
        %1283 = vmatprep.subr.mxu0 0.0
        %1284 = vmatpush1.msra.mxu0 0.0
        %1285 = vmatprep.subr.mxu0 0.0
        %1286 = vmatpush1.msra.mxu0 0.0
        %1287 = vmatprep.subr.mxu0 0.0
        %1288 = vmatpush1.msra.mxu0 0.0
        %1289 = vmatprep.subr.mxu0 0.0
        %1290 = vmatpush1.msra.mxu0 0.0
        %1291 = vmatprep.subr.mxu0 0.0
        %1292 = vmatpush1.msra.mxu0 0.0
        %1293 = vmatprep.subr.mxu0 0.0
        %1294 = vmatpush1.msra.mxu0 0.0
        %1295 = vmatprep.subr.mxu0 0.0
        %1296 = vmatpush1.msra.mxu0 0.0
        %1297 = vmatprep.subr.mxu0 0.0
        %1298 = vmatpush1.msra.mxu0 0.0
        %1299 = vmatprep.subr.mxu0 0.0
        %1300 = vmatpush1.msra.mxu0 0.0
        %1301 = vmatprep.subr.mxu0 0.0
        %1302 = vmatpush1.msra.mxu0 0.0
        %1303 = vmatprep.subr.mxu0 0.0
        %1304 = vmatpush1.msra.mxu0 0.0
        %1305 = vmatprep.subr.mxu0 0.0
        %1306 = vmatpush1.msra.mxu0 0.0
        %1307 = vmatprep.subr.mxu0 0.0
        %1308 = vmatpush1.msra.mxu0 0.0
        %1309 = vmatprep.subr.mxu0 0.0
        %1310 = vmatpush1.msra.mxu0 0.0
        %1311 = vmatprep.subr.mxu0 0.0
        %1312 = vmatpush1.msra.mxu0 0.0
        %1313 = vmatprep.subr.mxu0 0.0
        %1314 = vmatpush1.msra.mxu0 0.0
        %1315 = vmatprep.subr.mxu0 0.0
        %1316 = vmatpush1.msra.mxu0 0.0
        %1317 = vmatprep.subr.mxu0 0.0
        %1318 = vmatpush1.msra.mxu0 0.0
        %1319 = vmatprep.subr.mxu0 0.0
        %1320 = vmatpush1.msra.mxu0 0.0
        %1321 = vmatprep.subr.mxu0 0.0
        %1322 = vmatpush1.msra.mxu0 0.0
        %1323 = vmatprep.subr.mxu0 0.0
        %1324 = vmatpush1.msra.mxu0 0.0
        %1325 = vmatprep.subr.mxu0 0.0
        %1326 = vmatpush1.msra.mxu0 0.0
        %1327 = vmatprep.subr.mxu0 0.0
        %1328 = vmatpush1.msra.mxu0 0.0
        %1329 = vmatprep.subr.mxu0 0.0
        %1330 = vmatpush1.msra.mxu0 0.0
        %1331 = vmatprep.subr.mxu0 0.0
        %1332 = vmatpush1.msra.mxu0 0.0
        %1333 = vmatprep.subr.mxu0 0.0
        %1334 = vmatpush1.msra.mxu0 0.0
        %1335 = vmatprep.subr.mxu0 0.0
        %1336 = vmatpush1.msra.mxu0 0.0
        %1337 = vmatprep.mubr.f32.mxu0 0.0
        %1338 = vmatmul.mubr.f32.gmra.mrb[0].mxu0 %v1271
        %v1339 = vpop.f32.mrb[0].mxu0
        %v1340 = vadd.f32 0.0, %v1339
        %v1341 = vpop.f32.mrb[0].mxu0
        %1342 = vdwg.mxu0
        %1343 = vrot.lane.b32.xlu0 %v528, 112
        %v1344 = vpop.permute.xlu0 %1343
        %1345 = vrot.lane.b32.xlu0 %v605, 112
        %v1346 = vpop.permute.xlu0 %1345
        %v1347 = vsel %vm685, %v1344, 0
        %v1349 = vsel %vm685, %v1346, 0
        %1351 = vmatprep.subr.mxu0 0.0
        %1352 = vmatpush1.xpose.msra.mxu0 %v1349
        %1353 = vmatprep.subr.mxu0 0.0
        %1354 = vmatpush1.xpose.msra.mxu0 0.0
        %1355 = vmatprep.subr.mxu0 0.0
        %1356 = vmatpush1.xpose.msra.mxu0 0.0
        %1357 = vmatprep.subr.mxu0 0.0
        %1358 = vmatpush1.xpose.msra.mxu0 0.0
        %1359 = vmatprep.subr.mxu0 0.0
        %1360 = vmatpush1.xpose.msra.mxu0 0.0
        %1361 = vmatprep.subr.mxu0 0.0
        %1362 = vmatpush1.xpose.msra.mxu0 0.0
        %1363 = vmatprep.subr.mxu0 0.0
        %1364 = vmatpush1.xpose.msra.mxu0 0.0
        %1365 = vmatprep.subr.mxu0 0.0
        %1366 = vmatpush1.xpose.msra.mxu0 0.0
        %1367 = vmatprep.subr.mxu0 0.0
        %1368 = vmatpush1.xpose.msra.mxu0 0.0
        %1369 = vmatprep.subr.mxu0 0.0
        %1370 = vmatpush1.xpose.msra.mxu0 0.0
        %1371 = vmatprep.subr.mxu0 0.0
        %1372 = vmatpush1.xpose.msra.mxu0 0.0
        %1373 = vmatprep.subr.mxu0 0.0
        %1374 = vmatpush1.xpose.msra.mxu0 0.0
        %1375 = vmatprep.subr.mxu0 0.0
        %1376 = vmatpush1.xpose.msra.mxu0 0.0
        %1377 = vmatprep.subr.mxu0 0.0
        %1378 = vmatpush1.xpose.msra.mxu0 0.0
        %1379 = vmatprep.subr.mxu0 0.0
        %1380 = vmatpush1.xpose.msra.mxu0 0.0
        %1381 = vmatprep.subr.mxu0 0.0
        %1382 = vmatpush1.xpose.msra.mxu0 0.0
        %1383 = vmatprep.subr.mxu0 0.0
        %1384 = vmatpush1.xpose.msra.mxu0 0.0
        %1385 = vmatprep.subr.mxu0 0.0
        %1386 = vmatpush1.xpose.msra.mxu0 0.0
        %1387 = vmatprep.subr.mxu0 0.0
        %1388 = vmatpush1.xpose.msra.mxu0 0.0
        %1389 = vmatprep.subr.mxu0 0.0
        %1390 = vmatpush1.xpose.msra.mxu0 0.0
        %1391 = vmatprep.subr.mxu0 0.0
        %1392 = vmatpush1.xpose.msra.mxu0 0.0
        %1393 = vmatprep.subr.mxu0 0.0
        %1394 = vmatpush1.xpose.msra.mxu0 0.0
        %1395 = vmatprep.subr.mxu0 0.0
        %1396 = vmatpush1.xpose.msra.mxu0 0.0
        %1397 = vmatprep.subr.mxu0 0.0
        %1398 = vmatpush1.xpose.msra.mxu0 0.0
        %1399 = vmatprep.subr.mxu0 0.0
        %1400 = vmatpush1.xpose.msra.mxu0 0.0
        %1401 = vmatprep.subr.mxu0 0.0
        %1402 = vmatpush1.xpose.msra.mxu0 0.0
        %1403 = vmatprep.subr.mxu0 0.0
        %1404 = vmatpush1.xpose.msra.mxu0 0.0
        %1405 = vmatprep.subr.mxu0 0.0
        %1406 = vmatpush1.xpose.msra.mxu0 0.0
        %1407 = vmatprep.subr.mxu0 0.0
        %1408 = vmatpush1.xpose.msra.mxu0 0.0
        %1409 = vmatprep.subr.mxu0 0.0
        %1410 = vmatpush1.xpose.msra.mxu0 0.0
        %1411 = vmatprep.subr.mxu0 0.0
        %1412 = vmatpush1.xpose.msra.mxu0 0.0
        %1413 = vmatprep.subr.mxu0 0.0
        %1414 = vmatpush1.xpose.msra.mxu0 0.0
        %1415 = vmatprep.mubr.f32.mxu0 0.0
        %1416 = vmatmul.mubr.f32.gmra.mrb[0].mxu0 %v1347
        %v1417 = vpop.f32.mrb[0].mxu0
        %v1418 = vadd.f32 0.0, %v1417
        %v1419 = vpop.f32.mrb[0].mxu0
        %1420 = vdwg.mxu0
        %v1421 = vsel %vm762, %v1418, -inf
        %1422 = vmax.xlane.f32.xlu0 %v1421
        %v1423 = vpop.xlane.xlu0 %1422
        %v1424 = vsub.f32 %v1418, %v1423
        %v1425 = vmul.f32 %v1424, 1.442695
        %v1426 = vpow.pop %v1425
        %v1427 = vsel %vm762, %v1426, 0.0
        %1428 = vadd.xlane.f32.xlu0 %v1427
        %v1429 = vpop.xlane.xlu0 %1428
        %v1430 = vrcp.pop %v1429
        %v1431 = vmul.f32 %v1426, %v1430
        %1432 = vrot.lane.b32.xlu0 %v682, 112
        %v1433 = vpop.permute.xlu0 %1432
        %v1436 = vsel %vm762, %v1431, 0
        %1438 = vmatprep.subr.mxu0 0.0
        %1439 = vmatpush1.msra.mxu0 %v1433
        %1440 = vmatprep.subr.mxu0 0.0
        %1441 = vmatpush1.msra.mxu0 0.0
        %1442 = vmatprep.subr.mxu0 0.0
        %1443 = vmatpush1.msra.mxu0 0.0
        %1444 = vmatprep.subr.mxu0 0.0
        %1445 = vmatpush1.msra.mxu0 0.0
        %1446 = vmatprep.subr.mxu0 0.0
        %1447 = vmatpush1.msra.mxu0 0.0
        %1448 = vmatprep.subr.mxu0 0.0
        %1449 = vmatpush1.msra.mxu0 0.0
        %1450 = vmatprep.subr.mxu0 0.0
        %1451 = vmatpush1.msra.mxu0 0.0
        %1452 = vmatprep.subr.mxu0 0.0
        %1453 = vmatpush1.msra.mxu0 0.0
        %1454 = vmatprep.subr.mxu0 0.0
        %1455 = vmatpush1.msra.mxu0 0.0
        %1456 = vmatprep.subr.mxu0 0.0
        %1457 = vmatpush1.msra.mxu0 0.0
        %1458 = vmatprep.subr.mxu0 0.0
        %1459 = vmatpush1.msra.mxu0 0.0
        %1460 = vmatprep.subr.mxu0 0.0
        %1461 = vmatpush1.msra.mxu0 0.0
        %1462 = vmatprep.subr.mxu0 0.0
        %1463 = vmatpush1.msra.mxu0 0.0
        %1464 = vmatprep.subr.mxu0 0.0
        %1465 = vmatpush1.msra.mxu0 0.0
        %1466 = vmatprep.subr.mxu0 0.0
        %1467 = vmatpush1.msra.mxu0 0.0
        %1468 = vmatprep.subr.mxu0 0.0
        %1469 = vmatpush1.msra.mxu0 0.0
        %1470 = vmatprep.subr.mxu0 0.0
        %1471 = vmatpush1.msra.mxu0 0.0
        %1472 = vmatprep.subr.mxu0 0.0
        %1473 = vmatpush1.msra.mxu0 0.0
        %1474 = vmatprep.subr.mxu0 0.0
        %1475 = vmatpush1.msra.mxu0 0.0
        %1476 = vmatprep.subr.mxu0 0.0
        %1477 = vmatpush1.msra.mxu0 0.0
        %1478 = vmatprep.subr.mxu0 0.0
        %1479 = vmatpush1.msra.mxu0 0.0
        %1480 = vmatprep.subr.mxu0 0.0
        %1481 = vmatpush1.msra.mxu0 0.0
        %1482 = vmatprep.subr.mxu0 0.0
        %1483 = vmatpush1.msra.mxu0 0.0
        %1484 = vmatprep.subr.mxu0 0.0
        %1485 = vmatpush1.msra.mxu0 0.0
        %1486 = vmatprep.subr.mxu0 0.0
        %1487 = vmatpush1.msra.mxu0 0.0
        %1488 = vmatprep.subr.mxu0 0.0
        %1489 = vmatpush1.msra.mxu0 0.0
        %1490 = vmatprep.subr.mxu0 0.0
        %1491 = vmatpush1.msra.mxu0 0.0
        %1492 = vmatprep.subr.mxu0 0.0
        %1493 = vmatpush1.msra.mxu0 0.0
        %1494 = vmatprep.subr.mxu0 0.0
        %1495 = vmatpush1.msra.mxu0 0.0
        %1496 = vmatprep.subr.mxu0 0.0
        %1497 = vmatpush1.msra.mxu0 0.0
        %1498 = vmatprep.subr.mxu0 0.0
        %1499 = vmatpush1.msra.mxu0 0.0
        %1500 = vmatprep.subr.mxu0 0.0
        %1501 = vmatpush1.msra.mxu0 0.0
        %1502 = vmatprep.mubr.f32.mxu0 0.0
        %1503 = vmatmul.mubr.f32.gmra.mrb[0].mxu0 %v1436
        %v1504 = vpop.f32.mrb[0].mxu0
        %v1505 = vadd.f32 0.0, %v1504
        %v1506 = vpop.f32.mrb[0].mxu0
        %1507 = vdwg.mxu0
        %1508 = vrot.lane.b32.xlu0 %v528, 108
        %v1509 = vpop.permute.xlu0 %1508
        %1510 = vrot.lane.b32.xlu0 %v605, 108
        %v1511 = vpop.permute.xlu0 %1510
        %v1512 = vsel %vm685, %v1509, 0
        %v1514 = vsel %vm685, %v1511, 0
        %1516 = vmatprep.subr.mxu0 0.0
        %1517 = vmatpush1.xpose.msra.mxu0 %v1514
        %1518 = vmatprep.subr.mxu0 0.0
        %1519 = vmatpush1.xpose.msra.mxu0 0.0
        %1520 = vmatprep.subr.mxu0 0.0
        %1521 = vmatpush1.xpose.msra.mxu0 0.0
        %1522 = vmatprep.subr.mxu0 0.0
        %1523 = vmatpush1.xpose.msra.mxu0 0.0
        %1524 = vmatprep.subr.mxu0 0.0
        %1525 = vmatpush1.xpose.msra.mxu0 0.0
        %1526 = vmatprep.subr.mxu0 0.0
        %1527 = vmatpush1.xpose.msra.mxu0 0.0
        %1528 = vmatprep.subr.mxu0 0.0
        %1529 = vmatpush1.xpose.msra.mxu0 0.0
        %1530 = vmatprep.subr.mxu0 0.0
        %1531 = vmatpush1.xpose.msra.mxu0 0.0
        %1532 = vmatprep.subr.mxu0 0.0
        %1533 = vmatpush1.xpose.msra.mxu0 0.0
        %1534 = vmatprep.subr.mxu0 0.0
        %1535 = vmatpush1.xpose.msra.mxu0 0.0
        %1536 = vmatprep.subr.mxu0 0.0
        %1537 = vmatpush1.xpose.msra.mxu0 0.0
        %1538 = vmatprep.subr.mxu0 0.0
        %1539 = vmatpush1.xpose.msra.mxu0 0.0
        %1540 = vmatprep.subr.mxu0 0.0
        %1541 = vmatpush1.xpose.msra.mxu0 0.0
        %1542 = vmatprep.subr.mxu0 0.0
        %1543 = vmatpush1.xpose.msra.mxu0 0.0
        %1544 = vmatprep.subr.mxu0 0.0
        %1545 = vmatpush1.xpose.msra.mxu0 0.0
        %1546 = vmatprep.subr.mxu0 0.0
        %1547 = vmatpush1.xpose.msra.mxu0 0.0
        %1548 = vmatprep.subr.mxu0 0.0
        %1549 = vmatpush1.xpose.msra.mxu0 0.0
        %1550 = vmatprep.subr.mxu0 0.0
        %1551 = vmatpush1.xpose.msra.mxu0 0.0
        %1552 = vmatprep.subr.mxu0 0.0
        %1553 = vmatpush1.xpose.msra.mxu0 0.0
        %1554 = vmatprep.subr.mxu0 0.0
        %1555 = vmatpush1.xpose.msra.mxu0 0.0
        %1556 = vmatprep.subr.mxu0 0.0
        %1557 = vmatpush1.xpose.msra.mxu0 0.0
        %1558 = vmatprep.subr.mxu0 0.0
        %1559 = vmatpush1.xpose.msra.mxu0 0.0
        %1560 = vmatprep.subr.mxu0 0.0
        %1561 = vmatpush1.xpose.msra.mxu0 0.0
        %1562 = vmatprep.subr.mxu0 0.0
        %1563 = vmatpush1.xpose.msra.mxu0 0.0
        %1564 = vmatprep.subr.mxu0 0.0
        %1565 = vmatpush1.xpose.msra.mxu0 0.0
        %1566 = vmatprep.subr.mxu0 0.0
        %1567 = vmatpush1.xpose.msra.mxu0 0.0
        %1568 = vmatprep.subr.mxu0 0.0
        %1569 = vmatpush1.xpose.msra.mxu0 0.0
        %1570 = vmatprep.subr.mxu0 0.0
        %1571 = vmatpush1.xpose.msra.mxu0 0.0
        %1572 = vmatprep.subr.mxu0 0.0
        %1573 = vmatpush1.xpose.msra.mxu0 0.0
        %1574 = vmatprep.subr.mxu0 0.0
        %1575 = vmatpush1.xpose.msra.mxu0 0.0
        %1576 = vmatprep.subr.mxu0 0.0
        %1577 = vmatpush1.xpose.msra.mxu0 0.0
        %1578 = vmatprep.subr.mxu0 0.0
        %1579 = vmatpush1.xpose.msra.mxu0 0.0
        %1580 = vmatprep.mubr.f32.mxu0 0.0
        %1581 = vmatmul.mubr.f32.gmra.mrb[0].mxu0 %v1512
        %v1582 = vpop.f32.mrb[0].mxu0
        %v1583 = vadd.f32 0.0, %v1582
        %v1584 = vpop.f32.mrb[0].mxu0
        %1585 = vdwg.mxu0
        %v1586 = vsel %vm762, %v1583, -inf
        %1587 = vmax.xlane.f32.xlu0 %v1586
        %v1588 = vpop.xlane.xlu0 %1587
        %v1589 = vsub.f32 %v1583, %v1588
        %v1590 = vmul.f32 %v1589, 1.442695
        %v1591 = vpow.pop %v1590
        %v1592 = vsel %vm762, %v1591, 0.0
        %1593 = vadd.xlane.f32.xlu0 %v1592
        %v1594 = vpop.xlane.xlu0 %1593
        %v1595 = vrcp.pop %v1594
        %v1596 = vmul.f32 %v1591, %v1595
        %1597 = vrot.lane.b32.xlu0 %v682, 108
        %v1598 = vpop.permute.xlu0 %1597
        %v1601 = vsel %vm762, %v1596, 0
        %1603 = vmatprep.subr.mxu0 0.0
        %1604 = vmatpush1.msra.mxu0 %v1598
        %1605 = vmatprep.subr.mxu0 0.0
        %1606 = vmatpush1.msra.mxu0 0.0
        %1607 = vmatprep.subr.mxu0 0.0
        %1608 = vmatpush1.msra.mxu0 0.0
        %1609 = vmatprep.subr.mxu0 0.0
        %1610 = vmatpush1.msra.mxu0 0.0
        %1611 = vmatprep.subr.mxu0 0.0
        %1612 = vmatpush1.msra.mxu0 0.0
        %1613 = vmatprep.subr.mxu0 0.0
        %1614 = vmatpush1.msra.mxu0 0.0
        %1615 = vmatprep.subr.mxu0 0.0
        %1616 = vmatpush1.msra.mxu0 0.0
        %1617 = vmatprep.subr.mxu0 0.0
        %1618 = vmatpush1.msra.mxu0 0.0
        %1619 = vmatprep.subr.mxu0 0.0
        %1620 = vmatpush1.msra.mxu0 0.0
        %1621 = vmatprep.subr.mxu0 0.0
        %1622 = vmatpush1.msra.mxu0 0.0
        %1623 = vmatprep.subr.mxu0 0.0
        %1624 = vmatpush1.msra.mxu0 0.0
        %1625 = vmatprep.subr.mxu0 0.0
        %1626 = vmatpush1.msra.mxu0 0.0
        %1627 = vmatprep.subr.mxu0 0.0
        %1628 = vmatpush1.msra.mxu0 0.0
        %1629 = vmatprep.subr.mxu0 0.0
        %1630 = vmatpush1.msra.mxu0 0.0
        %1631 = vmatprep.subr.mxu0 0.0
        %1632 = vmatpush1.msra.mxu0 0.0
        %1633 = vmatprep.subr.mxu0 0.0
        %1634 = vmatpush1.msra.mxu0 0.0
        %1635 = vmatprep.subr.mxu0 0.0
        %1636 = vmatpush1.msra.mxu0 0.0
        %1637 = vmatprep.subr.mxu0 0.0
        %1638 = vmatpush1.msra.mxu0 0.0
        %1639 = vmatprep.subr.mxu0 0.0
        %1640 = vmatpush1.msra.mxu0 0.0
        %1641 = vmatprep.subr.mxu0 0.0
        %1642 = vmatpush1.msra.mxu0 0.0
        %1643 = vmatprep.subr.mxu0 0.0
        %1644 = vmatpush1.msra.mxu0 0.0
        %1645 = vmatprep.subr.mxu0 0.0
        %1646 = vmatpush1.msra.mxu0 0.0
        %1647 = vmatprep.subr.mxu0 0.0
        %1648 = vmatpush1.msra.mxu0 0.0
        %1649 = vmatprep.subr.mxu0 0.0
        %1650 = vmatpush1.msra.mxu0 0.0
        %1651 = vmatprep.subr.mxu0 0.0
        %1652 = vmatpush1.msra.mxu0 0.0
        %1653 = vmatprep.subr.mxu0 0.0
        %1654 = vmatpush1.msra.mxu0 0.0
        %1655 = vmatprep.subr.mxu0 0.0
        %1656 = vmatpush1.msra.mxu0 0.0
        %1657 = vmatprep.subr.mxu0 0.0
        %1658 = vmatpush1.msra.mxu0 0.0
        %1659 = vmatprep.subr.mxu0 0.0
        %1660 = vmatpush1.msra.mxu0 0.0
        %1661 = vmatprep.subr.mxu0 0.0
        %1662 = vmatpush1.msra.mxu0 0.0
        %1663 = vmatprep.subr.mxu0 0.0
        %1664 = vmatpush1.msra.mxu0 0.0
        %1665 = vmatprep.subr.mxu0 0.0
        %1666 = vmatpush1.msra.mxu0 0.0
        %1667 = vmatprep.mubr.f32.mxu0 0.0
        %1668 = vmatmul.mubr.f32.gmra.mrb[0].mxu0 %v1601
        %v1669 = vpop.f32.mrb[0].mxu0
        %v1670 = vadd.f32 0.0, %v1669
        %v1671 = vpop.f32.mrb[0].mxu0
        %1672 = vdwg.mxu0
        %1673 = vrot.lane.b32.xlu0 %v528, 104
        %v1674 = vpop.permute.xlu0 %1673
        %1675 = vrot.lane.b32.xlu0 %v605, 104
        %v1676 = vpop.permute.xlu0 %1675
        %v1677 = vsel %vm685, %v1674, 0
        %v1679 = vsel %vm685, %v1676, 0
        %1681 = vmatprep.subr.mxu0 0.0
        %1682 = vmatpush1.xpose.msra.mxu0 %v1679
        %1683 = vmatprep.subr.mxu0 0.0
        %1684 = vmatpush1.xpose.msra.mxu0 0.0
        %1685 = vmatprep.subr.mxu0 0.0
        %1686 = vmatpush1.xpose.msra.mxu0 0.0
        %1687 = vmatprep.subr.mxu0 0.0
        %1688 = vmatpush1.xpose.msra.mxu0 0.0
        %1689 = vmatprep.subr.mxu0 0.0
        %1690 = vmatpush1.xpose.msra.mxu0 0.0
        %1691 = vmatprep.subr.mxu0 0.0
        %1692 = vmatpush1.xpose.msra.mxu0 0.0
        %1693 = vmatprep.subr.mxu0 0.0
        %1694 = vmatpush1.xpose.msra.mxu0 0.0
        %1695 = vmatprep.subr.mxu0 0.0
        %1696 = vmatpush1.xpose.msra.mxu0 0.0
        %1697 = vmatprep.subr.mxu0 0.0
        %1698 = vmatpush1.xpose.msra.mxu0 0.0
        %1699 = vmatprep.subr.mxu0 0.0
        %1700 = vmatpush1.xpose.msra.mxu0 0.0
        %1701 = vmatprep.subr.mxu0 0.0
        %1702 = vmatpush1.xpose.msra.mxu0 0.0
        %1703 = vmatprep.subr.mxu0 0.0
        %1704 = vmatpush1.xpose.msra.mxu0 0.0
        %1705 = vmatprep.subr.mxu0 0.0
        %1706 = vmatpush1.xpose.msra.mxu0 0.0
        %1707 = vmatprep.subr.mxu0 0.0
        %1708 = vmatpush1.xpose.msra.mxu0 0.0
        %1709 = vmatprep.subr.mxu0 0.0
        %1710 = vmatpush1.xpose.msra.mxu0 0.0
        %1711 = vmatprep.subr.mxu0 0.0
        %1712 = vmatpush1.xpose.msra.mxu0 0.0
        %1713 = vmatprep.subr.mxu0 0.0
        %1714 = vmatpush1.xpose.msra.mxu0 0.0
        %1715 = vmatprep.subr.mxu0 0.0
        %1716 = vmatpush1.xpose.msra.mxu0 0.0
        %1717 = vmatprep.subr.mxu0 0.0
        %1718 = vmatpush1.xpose.msra.mxu0 0.0
        %1719 = vmatprep.subr.mxu0 0.0
        %1720 = vmatpush1.xpose.msra.mxu0 0.0
        %1721 = vmatprep.subr.mxu0 0.0
        %1722 = vmatpush1.xpose.msra.mxu0 0.0
        %1723 = vmatprep.subr.mxu0 0.0
        %1724 = vmatpush1.xpose.msra.mxu0 0.0
        %1725 = vmatprep.subr.mxu0 0.0
        %1726 = vmatpush1.xpose.msra.mxu0 0.0
        %1727 = vmatprep.subr.mxu0 0.0
        %1728 = vmatpush1.xpose.msra.mxu0 0.0
        %1729 = vmatprep.subr.mxu0 0.0
        %1730 = vmatpush1.xpose.msra.mxu0 0.0
        %1731 = vmatprep.subr.mxu0 0.0
        %1732 = vmatpush1.xpose.msra.mxu0 0.0
        %1733 = vmatprep.subr.mxu0 0.0
        %1734 = vmatpush1.xpose.msra.mxu0 0.0
        %1735 = vmatprep.subr.mxu0 0.0
        %1736 = vmatpush1.xpose.msra.mxu0 0.0
        %1737 = vmatprep.subr.mxu0 0.0
        %1738 = vmatpush1.xpose.msra.mxu0 0.0
        %1739 = vmatprep.subr.mxu0 0.0
        %1740 = vmatpush1.xpose.msra.mxu0 0.0
        %1741 = vmatprep.subr.mxu0 0.0
        %1742 = vmatpush1.xpose.msra.mxu0 0.0
        %1743 = vmatprep.subr.mxu0 0.0
        %1744 = vmatpush1.xpose.msra.mxu0 0.0
        %1745 = vmatprep.mubr.f32.mxu0 0.0
        %1746 = vmatmul.mubr.f32.gmra.mrb[0].mxu0 %v1677
        %v1747 = vpop.f32.mrb[0].mxu0
        %v1748 = vadd.f32 0.0, %v1747
        %v1749 = vpop.f32.mrb[0].mxu0
        %1750 = vdwg.mxu0
        %v1751 = vsel %vm762, %v1748, -inf
        %1752 = vmax.xlane.f32.xlu0 %v1751
        %v1753 = vpop.xlane.xlu0 %1752
        %v1754 = vsub.f32 %v1748, %v1753
        %v1755 = vmul.f32 %v1754, 1.442695
        %v1756 = vpow.pop %v1755
        %v1757 = vsel %vm762, %v1756, 0.0
        %1758 = vadd.xlane.f32.xlu0 %v1757
        %v1759 = vpop.xlane.xlu0 %1758
        %v1760 = vrcp.pop %v1759
        %v1761 = vmul.f32 %v1756, %v1760
        %1762 = vrot.lane.b32.xlu0 %v682, 104
        %v1763 = vpop.permute.xlu0 %1762
        %v1766 = vsel %vm762, %v1761, 0
        %1768 = vmatprep.subr.mxu0 0.0
        %1769 = vmatpush1.msra.mxu0 %v1763
        %1770 = vmatprep.subr.mxu0 0.0
        %1771 = vmatpush1.msra.mxu0 0.0
        %1772 = vmatprep.subr.mxu0 0.0
        %1773 = vmatpush1.msra.mxu0 0.0
        %1774 = vmatprep.subr.mxu0 0.0
        %1775 = vmatpush1.msra.mxu0 0.0
        %1776 = vmatprep.subr.mxu0 0.0
        %1777 = vmatpush1.msra.mxu0 0.0
        %1778 = vmatprep.subr.mxu0 0.0
        %1779 = vmatpush1.msra.mxu0 0.0
        %1780 = vmatprep.subr.mxu0 0.0
        %1781 = vmatpush1.msra.mxu0 0.0
        %1782 = vmatprep.subr.mxu0 0.0
        %1783 = vmatpush1.msra.mxu0 0.0
        %1784 = vmatprep.subr.mxu0 0.0
        %1785 = vmatpush1.msra.mxu0 0.0
        %1786 = vmatprep.subr.mxu0 0.0
        %1787 = vmatpush1.msra.mxu0 0.0
        %1788 = vmatprep.subr.mxu0 0.0
        %1789 = vmatpush1.msra.mxu0 0.0
        %1790 = vmatprep.subr.mxu0 0.0
        %1791 = vmatpush1.msra.mxu0 0.0
        %1792 = vmatprep.subr.mxu0 0.0
        %1793 = vmatpush1.msra.mxu0 0.0
        %1794 = vmatprep.subr.mxu0 0.0
        %1795 = vmatpush1.msra.mxu0 0.0
        %1796 = vmatprep.subr.mxu0 0.0
        %1797 = vmatpush1.msra.mxu0 0.0
        %1798 = vmatprep.subr.mxu0 0.0
        %1799 = vmatpush1.msra.mxu0 0.0
        %1800 = vmatprep.subr.mxu0 0.0
        %1801 = vmatpush1.msra.mxu0 0.0
        %1802 = vmatprep.subr.mxu0 0.0
        %1803 = vmatpush1.msra.mxu0 0.0
        %1804 = vmatprep.subr.mxu0 0.0
        %1805 = vmatpush1.msra.mxu0 0.0
        %1806 = vmatprep.subr.mxu0 0.0
        %1807 = vmatpush1.msra.mxu0 0.0
        %1808 = vmatprep.subr.mxu0 0.0
        %1809 = vmatpush1.msra.mxu0 0.0
        %1810 = vmatprep.subr.mxu0 0.0
        %1811 = vmatpush1.msra.mxu0 0.0
        %1812 = vmatprep.subr.mxu0 0.0
        %1813 = vmatpush1.msra.mxu0 0.0
        %1814 = vmatprep.subr.mxu0 0.0
        %1815 = vmatpush1.msra.mxu0 0.0
        %1816 = vmatprep.subr.mxu0 0.0
        %1817 = vmatpush1.msra.mxu0 0.0
        %1818 = vmatprep.subr.mxu0 0.0
        %1819 = vmatpush1.msra.mxu0 0.0
        %1820 = vmatprep.subr.mxu0 0.0
        %1821 = vmatpush1.msra.mxu0 0.0
        %1822 = vmatprep.subr.mxu0 0.0
        %1823 = vmatpush1.msra.mxu0 0.0
        %1824 = vmatprep.subr.mxu0 0.0
        %1825 = vmatpush1.msra.mxu0 0.0
        %1826 = vmatprep.subr.mxu0 0.0
        %1827 = vmatpush1.msra.mxu0 0.0
        %1828 = vmatprep.subr.mxu0 0.0
        %1829 = vmatpush1.msra.mxu0 0.0
        %1830 = vmatprep.subr.mxu0 0.0
        %1831 = vmatpush1.msra.mxu0 0.0
        %1832 = vmatprep.mubr.f32.mxu0 0.0
        %1833 = vmatmul.mubr.f32.gmra.mrb[0].mxu0 %v1766
        %v1834 = vpop.f32.mrb[0].mxu0
        %v1835 = vadd.f32 0.0, %v1834
        %v1836 = vpop.f32.mrb[0].mxu0
        %1837 = vdwg.mxu0
        %1838 = vrot.lane.b32.xlu0 %v528, 100
        %v1839 = vpop.permute.xlu0 %1838
        %1840 = vrot.lane.b32.xlu0 %v605, 100
        %v1841 = vpop.permute.xlu0 %1840
        %v1842 = vsel %vm685, %v1839, 0
        %v1844 = vsel %vm685, %v1841, 0
        %1846 = vmatprep.subr.mxu0 0.0
        %1847 = vmatpush1.xpose.msra.mxu0 %v1844
        %1848 = vmatprep.subr.mxu0 0.0
        %1849 = vmatpush1.xpose.msra.mxu0 0.0
        %1850 = vmatprep.subr.mxu0 0.0
        %1851 = vmatpush1.xpose.msra.mxu0 0.0
        %1852 = vmatprep.subr.mxu0 0.0
        %1853 = vmatpush1.xpose.msra.mxu0 0.0
        %1854 = vmatprep.subr.mxu0 0.0
        %1855 = vmatpush1.xpose.msra.mxu0 0.0
        %1856 = vmatprep.subr.mxu0 0.0
        %1857 = vmatpush1.xpose.msra.mxu0 0.0
        %1858 = vmatprep.subr.mxu0 0.0
        %1859 = vmatpush1.xpose.msra.mxu0 0.0
        %1860 = vmatprep.subr.mxu0 0.0
        %1861 = vmatpush1.xpose.msra.mxu0 0.0
        %1862 = vmatprep.subr.mxu0 0.0
        %1863 = vmatpush1.xpose.msra.mxu0 0.0
        %1864 = vmatprep.subr.mxu0 0.0
        %1865 = vmatpush1.xpose.msra.mxu0 0.0
        %1866 = vmatprep.subr.mxu0 0.0
        %1867 = vmatpush1.xpose.msra.mxu0 0.0
        %1868 = vmatprep.subr.mxu0 0.0
        %1869 = vmatpush1.xpose.msra.mxu0 0.0
        %1870 = vmatprep.subr.mxu0 0.0
        %1871 = vmatpush1.xpose.msra.mxu0 0.0
        %1872 = vmatprep.subr.mxu0 0.0
        %1873 = vmatpush1.xpose.msra.mxu0 0.0
        %1874 = vmatprep.subr.mxu0 0.0
        %1875 = vmatpush1.xpose.msra.mxu0 0.0
        %1876 = vmatprep.subr.mxu0 0.0
        %1877 = vmatpush1.xpose.msra.mxu0 0.0
        %1878 = vmatprep.subr.mxu0 0.0
        %1879 = vmatpush1.xpose.msra.mxu0 0.0
        %1880 = vmatprep.subr.mxu0 0.0
        %1881 = vmatpush1.xpose.msra.mxu0 0.0
        %1882 = vmatprep.subr.mxu0 0.0
        %1883 = vmatpush1.xpose.msra.mxu0 0.0
        %1884 = vmatprep.subr.mxu0 0.0
        %1885 = vmatpush1.xpose.msra.mxu0 0.0
        %1886 = vmatprep.subr.mxu0 0.0
        %1887 = vmatpush1.xpose.msra.mxu0 0.0
        %1888 = vmatprep.subr.mxu0 0.0
        %1889 = vmatpush1.xpose.msra.mxu0 0.0
        %1890 = vmatprep.subr.mxu0 0.0
        %1891 = vmatpush1.xpose.msra.mxu0 0.0
        %1892 = vmatprep.subr.mxu0 0.0
        %1893 = vmatpush1.xpose.msra.mxu0 0.0
        %1894 = vmatprep.subr.mxu0 0.0
        %1895 = vmatpush1.xpose.msra.mxu0 0.0
        %1896 = vmatprep.subr.mxu0 0.0
        %1897 = vmatpush1.xpose.msra.mxu0 0.0
        %1898 = vmatprep.subr.mxu0 0.0
        %1899 = vmatpush1.xpose.msra.mxu0 0.0
        %1900 = vmatprep.subr.mxu0 0.0
        %1901 = vmatpush1.xpose.msra.mxu0 0.0
        %1902 = vmatprep.subr.mxu0 0.0
        %1903 = vmatpush1.xpose.msra.mxu0 0.0
        %1904 = vmatprep.subr.mxu0 0.0
        %1905 = vmatpush1.xpose.msra.mxu0 0.0
        %1906 = vmatprep.subr.mxu0 0.0
        %1907 = vmatpush1.xpose.msra.mxu0 0.0
        %1908 = vmatprep.subr.mxu0 0.0
        %1909 = vmatpush1.xpose.msra.mxu0 0.0
        %1910 = vmatprep.mubr.f32.mxu0 0.0
        %1911 = vmatmul.mubr.f32.gmra.mrb[0].mxu0 %v1842
        %v1912 = vpop.f32.mrb[0].mxu0
        %v1913 = vadd.f32 0.0, %v1912
        %v1914 = vpop.f32.mrb[0].mxu0
        %1915 = vdwg.mxu0
        %v1916 = vsel %vm762, %v1913, -inf
        %1917 = vmax.xlane.f32.xlu0 %v1916
        %v1918 = vpop.xlane.xlu0 %1917
        %v1919 = vsub.f32 %v1913, %v1918
        %v1920 = vmul.f32 %v1919, 1.442695
        %v1921 = vpow.pop %v1920
        %v1922 = vsel %vm762, %v1921, 0.0
        %1923 = vadd.xlane.f32.xlu0 %v1922
        %v1924 = vpop.xlane.xlu0 %1923
        %v1925 = vrcp.pop %v1924
        %v1926 = vmul.f32 %v1921, %v1925
        %1927 = vrot.lane.b32.xlu0 %v682, 100
        %v1928 = vpop.permute.xlu0 %1927
        %v1931 = vsel %vm762, %v1926, 0
        %1933 = vmatprep.subr.mxu0 0.0
        %1934 = vmatpush1.msra.mxu0 %v1928
        %1935 = vmatprep.subr.mxu0 0.0
        %1936 = vmatpush1.msra.mxu0 0.0
        %1937 = vmatprep.subr.mxu0 0.0
        %1938 = vmatpush1.msra.mxu0 0.0
        %1939 = vmatprep.subr.mxu0 0.0
        %1940 = vmatpush1.msra.mxu0 0.0
        %1941 = vmatprep.subr.mxu0 0.0
        %1942 = vmatpush1.msra.mxu0 0.0
        %1943 = vmatprep.subr.mxu0 0.0
        %1944 = vmatpush1.msra.mxu0 0.0
        %1945 = vmatprep.subr.mxu0 0.0
        %1946 = vmatpush1.msra.mxu0 0.0
        %1947 = vmatprep.subr.mxu0 0.0
        %1948 = vmatpush1.msra.mxu0 0.0
        %1949 = vmatprep.subr.mxu0 0.0
        %1950 = vmatpush1.msra.mxu0 0.0
        %1951 = vmatprep.subr.mxu0 0.0
        %1952 = vmatpush1.msra.mxu0 0.0
        %1953 = vmatprep.subr.mxu0 0.0
        %1954 = vmatpush1.msra.mxu0 0.0
        %1955 = vmatprep.subr.mxu0 0.0
        %1956 = vmatpush1.msra.mxu0 0.0
        %1957 = vmatprep.subr.mxu0 0.0
        %1958 = vmatpush1.msra.mxu0 0.0
        %1959 = vmatprep.subr.mxu0 0.0
        %1960 = vmatpush1.msra.mxu0 0.0
        %1961 = vmatprep.subr.mxu0 0.0
        %1962 = vmatpush1.msra.mxu0 0.0
        %1963 = vmatprep.subr.mxu0 0.0
        %1964 = vmatpush1.msra.mxu0 0.0
        %1965 = vmatprep.subr.mxu0 0.0
        %1966 = vmatpush1.msra.mxu0 0.0
        %1967 = vmatprep.subr.mxu0 0.0
        %1968 = vmatpush1.msra.mxu0 0.0
        %1969 = vmatprep.subr.mxu0 0.0
        %1970 = vmatpush1.msra.mxu0 0.0
        %1971 = vmatprep.subr.mxu0 0.0
        %1972 = vmatpush1.msra.mxu0 0.0
        %1973 = vmatprep.subr.mxu0 0.0
        %1974 = vmatpush1.msra.mxu0 0.0
        %1975 = vmatprep.subr.mxu0 0.0
        %1976 = vmatpush1.msra.mxu0 0.0
        %1977 = vmatprep.subr.mxu0 0.0
        %1978 = vmatpush1.msra.mxu0 0.0
        %1979 = vmatprep.subr.mxu0 0.0
        %1980 = vmatpush1.msra.mxu0 0.0
        %1981 = vmatprep.subr.mxu0 0.0
        %1982 = vmatpush1.msra.mxu0 0.0
        %1983 = vmatprep.subr.mxu0 0.0
        %1984 = vmatpush1.msra.mxu0 0.0
        %1985 = vmatprep.subr.mxu0 0.0
        %1986 = vmatpush1.msra.mxu0 0.0
        %1987 = vmatprep.subr.mxu0 0.0
        %1988 = vmatpush1.msra.mxu0 0.0
        %1989 = vmatprep.subr.mxu0 0.0
        %1990 = vmatpush1.msra.mxu0 0.0
        %1991 = vmatprep.subr.mxu0 0.0
        %1992 = vmatpush1.msra.mxu0 0.0
        %1993 = vmatprep.subr.mxu0 0.0
        %1994 = vmatpush1.msra.mxu0 0.0
        %1995 = vmatprep.subr.mxu0 0.0
        %1996 = vmatpush1.msra.mxu0 0.0
        %1997 = vmatprep.mubr.f32.mxu0 0.0
        %1998 = vmatmul.mubr.f32.gmra.mrb[0].mxu0 %v1931
        %v1999 = vpop.f32.mrb[0].mxu0
        %v2000 = vadd.f32 0.0, %v1999
        %v2001 = vpop.f32.mrb[0].mxu0
        %2002 = vdwg.mxu0
        %2004 = vrot.lane.b32.xlu0 %v1010, 4
        %v2005 = vpop.permute.xlu0 %2004
        %2008 = vrot.lane.b32.xlu0 %v1175, 8
        %v2009 = vpop.permute.xlu0 %2008
        %2012 = vrot.lane.b32.xlu0 %v1340, 12
        %v2013 = vpop.permute.xlu0 %2012
        %2016 = vrot.lane.b32.xlu0 %v1505, 16
        %v2017 = vpop.permute.xlu0 %2016
        %2020 = vrot.lane.b32.xlu0 %v1670, 20
        %v2021 = vpop.permute.xlu0 %2020
        %2024 = vrot.lane.b32.xlu0 %v1835, 24
        %v2025 = vpop.permute.xlu0 %2024
        %2028 = vrot.lane.b32.xlu0 %v2000, 28
        %v2029 = vpop.permute.xlu0 %2028
        %v2031 = vsel %vm685, %v844, %v2005
        %v2032 = vsel %vm762, %v2031, %v2009
        %vm2033 = vcmask 97280
        %v2034 = vsel %vm2033, %v2032, %v2013
        %vm2035 = vcmask 130048
        %v2036 = vsel %vm2035, %v2034, %v2017
        %vm2037 = vcmask 162816
        %v2038 = vsel %vm2037, %v2036, %v2021
        %vm2039 = vcmask 195584
        %v2040 = vsel %vm2039, %v2038, %v2025
        %vm2041 = vcmask 228352
        %v2042 = vsel %vm2041, %v2040, %v2029
        %v2043 = vld [vmem:[#allocation13] sm:$0xff]
        %v2044 = vld [vmem:[#allocation13 + $0x8] sm:$0xff]
        %v2045 = vld [vmem:[#allocation13 + $0x10] sm:$0xff]
        %v2046 = vld [vmem:[#allocation13 + $0x18] sm:$0xff]
        %v2047 = vld [vmem:[%s7] sm:$0x1]
        %v2049 = vlaneseq
        %v2050 = vshrl.u32 %v2049, 7
        %v2051 = vsub.s32 0, %v2050
        %v2052 = vrot.slane %v2047, %v2051
        %v2055 = vsel %vm457, %v2042, 0
        %2057 = vmatprep.subr.mxu0 0.0
        %2058 = vmatpush1.msra.mxu0 %v2043
        %2059 = vmatprep.subr.mxu0 0.0
        %2060 = vmatpush1.msra.mxu0 %v2044
        %2061 = vmatprep.subr.mxu0 0.0
        %2062 = vmatpush1.msra.mxu0 %v2045
        %2063 = vmatprep.subr.mxu0 0.0
        %2064 = vmatpush1.msra.mxu0 %v2046
        %2065 = vmatprep.subr.mxu0 0.0
        %2066 = vmatpush1.msra.mxu0 0.0
        %2067 = vmatprep.subr.mxu0 0.0
        %2068 = vmatpush1.msra.mxu0 0.0
        %2069 = vmatprep.subr.mxu0 0.0
        %2070 = vmatpush1.msra.mxu0 0.0
        %2071 = vmatprep.subr.mxu0 0.0
        %2072 = vmatpush1.msra.mxu0 0.0
        %2073 = vmatprep.subr.mxu0 0.0
        %2074 = vmatpush1.msra.mxu0 0.0
        %2075 = vmatprep.subr.mxu0 0.0
        %2076 = vmatpush1.msra.mxu0 0.0
        %2077 = vmatprep.subr.mxu0 0.0
        %2078 = vmatpush1.msra.mxu0 0.0
        %2079 = vmatprep.subr.mxu0 0.0
        %2080 = vmatpush1.msra.mxu0 0.0
        %2081 = vmatprep.subr.mxu0 0.0
        %2082 = vmatpush1.msra.mxu0 0.0
        %2083 = vmatprep.subr.mxu0 0.0
        %2084 = vmatpush1.msra.mxu0 0.0
        %2085 = vmatprep.subr.mxu0 0.0
        %2086 = vmatpush1.msra.mxu0 0.0
        %2087 = vmatprep.subr.mxu0 0.0
        %2088 = vmatpush1.msra.mxu0 0.0
        %2089 = vmatprep.subr.mxu0 0.0
        %2090 = vmatpush1.msra.mxu0 0.0
        %2091 = vmatprep.subr.mxu0 0.0
        %2092 = vmatpush1.msra.mxu0 0.0
        %2093 = vmatprep.subr.mxu0 0.0
        %2094 = vmatpush1.msra.mxu0 0.0
        %2095 = vmatprep.subr.mxu0 0.0
        %2096 = vmatpush1.msra.mxu0 0.0
        %2097 = vmatprep.subr.mxu0 0.0
        %2098 = vmatpush1.msra.mxu0 0.0
        %2099 = vmatprep.subr.mxu0 0.0
        %2100 = vmatpush1.msra.mxu0 0.0
        %2101 = vmatprep.subr.mxu0 0.0
        %2102 = vmatpush1.msra.mxu0 0.0
        %2103 = vmatprep.subr.mxu0 0.0
        %2104 = vmatpush1.msra.mxu0 0.0
        %2105 = vmatprep.subr.mxu0 0.0
        %2106 = vmatpush1.msra.mxu0 0.0
        %2107 = vmatprep.subr.mxu0 0.0
        %2108 = vmatpush1.msra.mxu0 0.0
        %2109 = vmatprep.subr.mxu0 0.0
        %2110 = vmatpush1.msra.mxu0 0.0
        %2111 = vmatprep.subr.mxu0 0.0
        %2112 = vmatpush1.msra.mxu0 0.0
        %2113 = vmatprep.subr.mxu0 0.0
        %2114 = vmatpush1.msra.mxu0 0.0
        %2115 = vmatprep.subr.mxu0 0.0
        %2116 = vmatpush1.msra.mxu0 0.0
        %2117 = vmatprep.subr.mxu0 0.0
        %2118 = vmatpush1.msra.mxu0 0.0
        %2119 = vmatprep.subr.mxu0 0.0
        %2120 = vmatpush1.msra.mxu0 0.0
        %2121 = vmatprep.mubr.f32.mxu0 0.0
        %2122 = vmatmul.mubr.f32.gmra.mrb[0].mxu0 %v2055
        %v2123 = vpop.f32.mrb[0].mxu0
        %v2124 = vadd.f32 %v2052, %v2123
        %v2125 = vpop.f32.mrb[0].mxu0
        %2126 = vdwg.mxu0
        %2127 = vst.msk [vmem:[%s449] sm:$0xff] %vm457, %v2124
        %s2128 = sand.u32 %s221, 1
        %s2129 = scalar_lea.sflag [#allocation4], %s2128
        %s2130 = sand.u32 %s221, 1
        %s2131 = smul.addr %s2130, 8
        %s2132 = scalar_lea.vmem [#allocation14], %s2131
        // Predicated region
        $region81: #{tpu_custom_call.1} parent=51 // pred_check
          %p2133 = pneg %p231
        $region82: #{tpu_custom_call.1} parent=51 // pred_check_branch
          %2135 = sbr.rel (%p2133) target = $region84
        $region83: #{tpu_custom_call.1} parent=51 // pred_region
          %s2137 = ssub.s32 128, 128
          %2138 = vsyncadd %s2129, %s2137
          %s2139 = smul.addr %s30, 128
          %s2140 = scalar_lea.hbm %s8, %s2139
          %s2142 = sshll.u32 %s2132, 4
          %s2143 = int_to_ptr.vmem [resolvable:$true] %s2142
          %2145 = dma.vmem_to_hbm [thread:$0]  %s2143, 128, %s2140, %s2129
        $region84: #{tpu_custom_call.1} parent=51 // pred_fallthru
          _
      $region52: #{tpu_custom_call.1} parent=5 // pred_fallthru
        _
      %p2146 = scmp.le.s32.totalorder 2, %s25
      // Predicated region
      $region85: #{tpu_custom_call.1} parent=5 // pred_check
        %p2147 = pneg %p2146
      $region86: #{tpu_custom_call.1} parent=5 // pred_check_branch
        %2149 = sbr.rel (%p2147) target = $region88
      $region87: #{tpu_custom_call.1} parent=5 // pred_region
        %s2150 = ssub.s32 %s25, 2
        // Predicated region
        $region89: #{tpu_custom_call.1} parent=87 // pred_check
          %p2151 = pneg %p237
        $region90: #{tpu_custom_call.1} parent=87 // pred_check_branch
          %2153 = sbr.rel (%p2151) target = $region92
        $region91: #{tpu_custom_call.1} parent=87 // pred_region
          %s2154 = sand.u32 %s222, 1
          %s2155 = scalar_lea.sflag [#allocation4], %s2154
          %s2156 = sand.u32 %s222, 1
          %s2157 = smul.addr %s2156, 8
          %s2158 = scalar_lea.vmem [#allocation14], %s2157
          %2159 = dma.done %s2155, 128
        $region92: #{tpu_custom_call.1} parent=87 // pred_fallthru
          _
      $region88: #{tpu_custom_call.1} parent=5 // pred_fallthru
        _
    $region6: #{tpu_custom_call.1} parent=1 // loop_footer
      %s29 = sadd.s32 1, %s25
    $region7: #{tpu_custom_call.1} parent=1 // loop_footer_branch
      %24 = sbr.rel target = $region3
    $region8: #{tpu_custom_call.1} parent=1 // loop_exit
      _
    %2160 = vsyncpa [#allocation3], 1
    %s2161 = scalar_lea.sflag [#allocation3], 1
    %2162 = vsyncpa %s2161, 1
    %2163 = vsyncpa [#allocation6], 1
    %s2164 = scalar_lea.sflag [#allocation6], 1
    %2165 = vsyncpa %s2164, 1
    %2166 = vsyncpa [#allocation9], 1
    %2167 = vsyncpa [#allocation12], 1
    %2168 = vsyncpa [#allocation4], 1
    %s2169 = scalar_lea.sflag [#allocation4], 1
    %2170 = vsyncpa %s2169, 1

</llo_original>
